<compile_context>
chip_gen: v5e
topology: v5e:2x2
jax: 0.10.0
libtpu: 0.0.40
codegen_flags: <defaults>
</compile_context>

<pallas_src>
import numpy as np
import jax
import jax.numpy as jnp
from jax.experimental import pallas as pl
from jax.experimental.pallas import tpu as pltpu

L_IN = 32          # sequence length implied by Reshape(..., 128, 2)
LATENT = 2


# ----------------------------------------------------------------------------
# Parameter setup (glue, plain numpy/JAX): conv <-> dense-matrix conversion
# ----------------------------------------------------------------------------
def _conv1d_to_dense(W, L_in, stride=2, pad=1):
    """Conv1d(W: (C_out, C_in, K)) as matrix M s.t. flat(x) @ M = flat(conv(x))."""
    C_out, C_in, K = W.shape
    L_out = (L_in + 2 * pad - K) // stride + 1
    M = np.zeros((C_in * L_in, C_out * L_out), dtype=np.float32)
    for co in range(C_out):
        for ci in range(C_in):
            for t in range(L_out):
                for k in range(K):
                    j = t * stride - pad + k
                    if 0 <= j < L_in:
                        M[ci * L_in + j, co * L_out + t] = W[co, ci, k]
    return M, L_out


def _convT1d_to_dense(W, L_in, stride=2, pad=1, out_pad=1):
    """ConvTranspose1d(W: (C_in, C_out, K)) as matrix on the flattened layout."""
    C_in, C_out, K = W.shape
    L_out = (L_in - 1) * stride - 2 * pad + K + out_pad
    M = np.zeros((C_in * L_in, C_out * L_out), dtype=np.float32)
    for ci in range(C_in):
        for co in range(C_out):
            for t in range(L_in):
                for k in range(K):
                    j = t * stride - pad + k
                    if 0 <= j < L_out:
                        M[ci * L_in + t, co * L_out + j] = W[ci, co, k]
    return M, L_out


def _uniform(key, shape, fan_in):
    bound = 1.0 / np.sqrt(fan_in)
    return np.asarray(
        jax.random.uniform(key, shape, minval=-bound, maxval=bound), np.float32
    )


def init_flat_params(seed=0):
    """Deterministic parameters as a list of 9 (M, bias_row) layers.

    Layers 5 and 6 of the original module (Linear(256,2), Linear(2,256)) are
    folded into a single exact 256x256 matrix because there is no
    nonlinearity between them.
    """
    key = jax.random.PRNGKey(seed)
    keys = jax.random.split(key, 20)
    ki = iter(range(20))

    layers = []

    # --- encoder convs: Conv1d(c_in, c_out, 3, stride=2, padding=1) + ReLU ---
    L = L_IN
    for (c_in, c_out) in [(1, 16), (16, 32), (32, 64), (64, 128)]:
        fan = c_in * 3
        W = _uniform(keys[next(ki)], (c_out, c_in, 3), fan)
        b = _uniform(keys[next(ki)], (c_out,), fan)
        M, L = _conv1d_to_dense(W, L)
        layers.append((M, np.repeat(b, L)[None, :]))

    # --- encoder Linear(256, 2): y = x @ W5.T + b5 ---
    W5 = _uniform(keys[next(ki)], (LATENT, 128 * 2), 128 * 2)
    b5 = _uniform(keys[next(ki)], (LATENT,), 128 * 2)
    # --- decoder Linear(2, 256) (+ Reshape(B,128,2), a no-op in flat layout) ---
    W6 = _uniform(keys[next(ki)], (128 * 2, LATENT), LATENT)
    b6 = _uniform(keys[next(ki)], (128 * 2,), LATENT)
    # Fold: (x @ W5.T + b5) @ W6.T + b6 == x @ (W5.T @ W6.T) + (b5 @ W6.T + b6)
    W56 = W5.T.copy() @ W6.T.copy()                       # (256, 256)
    b56 = (b5[None, :] @ W6.T.copy()) + b6[None, :]       # (1, 256)
    layers.append((W56.astype(np.float32), b56.astype(np.float32)))

    # --- decoder ConvTranspose1d(c_in, c_out, 3, stride=2, pad=1, out_pad=1) ---
    L = 2
    for (c_in, c_out) in [(128, 64), (64, 32), (32, 16), (16, 1)]:
        fan = c_in * 3
        W = _uniform(keys[next(ki)], (c_in, c_out, 3), fan)
        b = _uniform(keys[next(ki)], (c_out,), fan)
        M, L = _convT1d_to_dense(W, L)
        layers.append((M, np.repeat(b, L)[None, :]))

    assert L == L_IN
    assert len(layers) == 9
    return layers


# ----------------------------------------------------------------------------
# Batch-tile selection (perf review items 1, 2, 7)
# ----------------------------------------------------------------------------
def _round_up(x, m):
    return ((x + m - 1) // m) * m


def _choose_tile_b(B):
    """Pick the batch tile.

    * B <= 256: round up to the 8-sublane granularity only — a small
      inference call must not pad/compute hundreds of redundant rows.
    * B  > 256: multiple of 256 (full-MXU M tiles on v6e/v7x, 4x v5e 128
      tiles), as large as possible up to 1024, but no larger than half the
      256-rounded batch so the grid has >= 2 steps for v7x megacore sharding.
    """
    if B <= 256:
        return _round_up(max(B, 1), 8)
    b256 = _round_up(B, 256)
    tile = (b256 // 2) // 256 * 256          # <= half the padded batch
    tile = max(256, min(1024, tile))
    return tile


# ----------------------------------------------------------------------------
# Pallas kernel: whole forward pass (bf16 matmuls, f32 accum/bias/activation)
# ----------------------------------------------------------------------------
def _autoenc_kernel(x_ref,
                    w1, b1, w2, b2, w3, b3, w4, b4, w56, b56,
                    w7, b7, w8, b8, w9, b9, w10, b10,
                    out_ref):
    def lin_relu(h, w_r, b_r):
        acc = jnp.dot(h, w_r[...], preferred_element_type=jnp.float32)
        return jnp.maximum(acc + b_r[...], 0.0).astype(jnp.bfloat16)

    h = x_ref[...]                         # (TILE_B, 32) bf16
    # encoder: 4x (Conv1d + ReLU), as dense matmuls on the flat layout
    h = lin_relu(h, w1, b1)
    h = lin_relu(h, w2, b2)
    h = lin_relu(h, w3, b3)
    h = lin_relu(h, w4, b4)
    # folded Linear(256,2) + Linear(2,256) (+ Reshape no-op) + ReLU
    h = lin_relu(h, w56, b56)
    # decoder: 3x (ConvTranspose1d + ReLU)
    h = lin_relu(h, w7, b7)
    h = lin_relu(h, w8, b8)
    h = lin_relu(h, w9, b9)
    # decoder: final ConvTranspose1d + Sigmoid (f32 math, EUP exp/recip),
    # stored as bf16 to halve writeback bytes / vst-slot pressure.
    acc = jnp.dot(h, w10[...], preferred_element_type=jnp.float32) + b10[...]
    out_ref[...] = jax.nn.sigmoid(acc).astype(out_ref.dtype)


def autoenc2d_forward(x_ncl, layers):
    """x_ncl: (B, 1, 32) float -> (B, 1, 32) float32."""
    B = x_ncl.shape[0]
    tile_b = _choose_tile_b(B)
    B_pad = _round_up(B, tile_b)

    # Cast straight to bf16, pad the bf16 array (no intermediate f32 pass).
    x_bf = x_ncl.reshape(B, -1).astype(jnp.bfloat16)        # (B, 32)
    if B_pad != B:
        x_bf = jnp.pad(x_bf, ((0, B_pad - B), (0, 0)))

    flat_args = []
    in_specs = [pl.BlockSpec((tile_b, L_IN), lambda i: (i, 0))]   # x: tiled on batch
    weight_bytes = 0
    for (M, b) in layers:
        Wb = jnp.asarray(M, jnp.bfloat16)           # bf16 weights for the MXU
        bb = jnp.asarray(b, jnp.float32)            # f32 biases (1, N)
        flat_args += [Wb, bb]
        weight_bytes += M.size * 2 + b.size * 4
        # Constant index maps: weights/biases stay VMEM-resident across steps.
        in_specs += [pl.BlockSpec(Wb.shape, lambda i: (0, 0)),
                     pl.BlockSpec(bb.shape, lambda i: (0, 0))]

    # Advisory cost hint so XLA overlaps this call sensibly in larger graphs.
    flops = 2 * B_pad * (L_IN * 256 + 7 * 256 * 256 + 256 * L_IN)
    cost = pl.CostEstimate(
        flops=flops,
        transcendentals=B_pad * L_IN,                      # sigmoid exp
        bytes_accessed=B_pad * (L_IN * 2 + L_IN * 2) + weight_bytes,
    )

    out_flat = pl.pallas_call(
        _autoenc_kernel,
        out_shape=jax.ShapeDtypeStruct((B_pad, L_IN), jnp.bfloat16),
        grid=(B_pad // tile_b,),
        in_specs=in_specs,
        out_specs=pl.BlockSpec((tile_b, L_IN), lambda i: (i, 0)),
        compiler_params=pltpu.CompilerParams(
            dimension_semantics=("parallel",)),     # megacore batch sharding (v7x)
        cost_estimate=cost,
    )(x_bf, *flat_args)
    # Cast back to the module's f32 output contract (tiny array; cheap).
    return out_flat[:B].astype(jnp.float32).reshape(B, 1, L_IN)


# ----------------------------------------------------------------------------
# Pure-JAX reference of the same folded / bf16 parameterization (sanity check)
# ----------------------------------------------------------------------------
def _ref_forward(x_ncl, layers):
    B = x_ncl.shape[0]
    h = x_ncl.reshape(B, -1).astype(jnp.bfloat16)
    n = len(layers)
    for i, (M, b) in enumerate(layers):
        acc = jnp.dot(h, jnp.asarray(M, jnp.bfloat16),
                      preferred_element_type=jnp.float32) + jnp.asarray(b, jnp.float32)
        if i < n - 1:
            h = jnp.maximum(acc, 0.0).astype(jnp.bfloat16)
        else:
            h = jax.nn.sigmoid(acc)
    return h.reshape(B, 1, L_IN).astype(jnp.float32)


if __name__ == "__main__":
    B = 2
    key = jax.random.PRNGKey(0)
    raw = jax.random.uniform(key, (B, L_IN), minval=0.1, maxval=1.0)
    # notebook's normalize(): divide each row by its max, then add channel dim
    x = (raw / jnp.max(raw, axis=1, keepdims=True))[:, None, :]   # (B, 1, 32)

    layers = init_flat_params(seed=0)

    out = autoenc2d_forward(x, layers)
    out = jax.block_until_ready(out)
    assert out.shape == (B, 1, L_IN) and out.dtype == jnp.float32

    ref = jax.block_until_ready(_ref_forward(x, layers))
    # bf16 matmuls (f32 accum) on both sides + bf16 output store; loose
    # tolerance covers rounding-order differences and the bf16 output pack.
    np.testing.assert_allclose(np.asarray(out), np.asarray(ref),
                               rtol=2e-2, atol=2e-2)

    print("KERNEL_OK")
</pallas_src>

<mosaic_0001>
module attributes {stable_mosaic.version = 11 : i64} {
  func.func @_autoenc_kernel(%arg0: i32, %arg1: memref<8x32xbf16, #tpu.memory_space<vmem>>, %arg2: memref<32x256xbf16, #tpu.memory_space<vmem>>, %arg3: memref<1x256xf32, #tpu.memory_space<vmem>>, %arg4: memref<256x256xbf16, #tpu.memory_space<vmem>>, %arg5: memref<1x256xf32, #tpu.memory_space<vmem>>, %arg6: memref<256x256xbf16, #tpu.memory_space<vmem>>, %arg7: memref<1x256xf32, #tpu.memory_space<vmem>>, %arg8: memref<256x256xbf16, #tpu.memory_space<vmem>>, %arg9: memref<1x256xf32, #tpu.memory_space<vmem>>, %arg10: memref<256x256xbf16, #tpu.memory_space<vmem>>, %arg11: memref<1x256xf32, #tpu.memory_space<vmem>>, %arg12: memref<256x256xbf16, #tpu.memory_space<vmem>>, %arg13: memref<1x256xf32, #tpu.memory_space<vmem>>, %arg14: memref<256x256xbf16, #tpu.memory_space<vmem>>, %arg15: memref<1x256xf32, #tpu.memory_space<vmem>>, %arg16: memref<256x256xbf16, #tpu.memory_space<vmem>>, %arg17: memref<1x256xf32, #tpu.memory_space<vmem>>, %arg18: memref<256x32xbf16, #tpu.memory_space<vmem>>, %arg19: memref<1x32xf32, #tpu.memory_space<vmem>>, %arg20: memref<8x32xbf16, #tpu.memory_space<vmem>>) attributes {dimension_semantics = [#tpu.dimension_semantics<parallel>], iteration_bounds = array<i64: 1>, scalar_prefetch = 0 : i64, scratch_operands = 0 : i64, tpu.core_type = #tpu.core_type<tc>, window_params = [{transform_indices = @transform_0, window_bounds = array<i64: 8, 32>}, {pipeline_mode = #tpu.pipeline_mode<synchronous>, transform_indices = @transform_1, window_bounds = array<i64: 32, 256>}, {pipeline_mode = #tpu.pipeline_mode<synchronous>, transform_indices = @transform_2, window_bounds = array<i64: 1, 256>}, {pipeline_mode = #tpu.pipeline_mode<synchronous>, transform_indices = @transform_3, window_bounds = array<i64: 256, 256>}, {pipeline_mode = #tpu.pipeline_mode<synchronous>, transform_indices = @transform_4, window_bounds = array<i64: 1, 256>}, {pipeline_mode = #tpu.pipeline_mode<synchronous>, transform_indices = @transform_5, window_bounds = array<i64: 256, 256>}, {pipeline_mode = #tpu.pipeline_mode<synchronous>, transform_indices = @transform_6, window_bounds = array<i64: 1, 256>}, {pipeline_mode = #tpu.pipeline_mode<synchronous>, transform_indices = @transform_7, window_bounds = array<i64: 256, 256>}, {pipeline_mode = #tpu.pipeline_mode<synchronous>, transform_indices = @transform_8, window_bounds = array<i64: 1, 256>}, {pipeline_mode = #tpu.pipeline_mode<synchronous>, transform_indices = @transform_9, window_bounds = array<i64: 256, 256>}, {pipeline_mode = #tpu.pipeline_mode<synchronous>, transform_indices = @transform_10, window_bounds = array<i64: 1, 256>}, {pipeline_mode = #tpu.pipeline_mode<synchronous>, transform_indices = @transform_11, window_bounds = array<i64: 256, 256>}, {pipeline_mode = #tpu.pipeline_mode<synchronous>, transform_indices = @transform_12, window_bounds = array<i64: 1, 256>}, {pipeline_mode = #tpu.pipeline_mode<synchronous>, transform_indices = @transform_13, window_bounds = array<i64: 256, 256>}, {pipeline_mode = #tpu.pipeline_mode<synchronous>, transform_indices = @transform_14, window_bounds = array<i64: 1, 256>}, {pipeline_mode = #tpu.pipeline_mode<synchronous>, transform_indices = @transform_15, window_bounds = array<i64: 256, 256>}, {pipeline_mode = #tpu.pipeline_mode<synchronous>, transform_indices = @transform_16, window_bounds = array<i64: 1, 256>}, {pipeline_mode = #tpu.pipeline_mode<synchronous>, transform_indices = @transform_17, window_bounds = array<i64: 256, 32>}, {pipeline_mode = #tpu.pipeline_mode<synchronous>, transform_indices = @transform_18, window_bounds = array<i64: 1, 32>}, {transform_indices = @transform_19, window_bounds = array<i64: 8, 32>}]} {
    %c0 = arith.constant 0 : index
    %c0_0 = arith.constant 0 : index
    %0 = vector.load %arg1[%c0, %c0_0] : memref<8x32xbf16, #tpu.memory_space<vmem>>, vector<8x32xbf16>
    %c0_1 = arith.constant 0 : index
    %c0_2 = arith.constant 0 : index
    %1 = vector.load %arg2[%c0_1, %c0_2] : memref<32x256xbf16, #tpu.memory_space<vmem>>, vector<32x256xbf16>
    %cst = arith.constant dense<0.000000e+00> : vector<8x256xf32>
    %2 = tpu.matmul %0, %1, %cst {dimension_numbers = #tpu.dot_dimension_numbers<[1], [0], [0], [1], [0, 0, 1, 1], [], []>} : vector<8x32xbf16>, vector<32x256xbf16>, vector<8x256xf32> -> vector<8x256xf32>
    %c0_3 = arith.constant 0 : index
    %c0_4 = arith.constant 0 : index
    %3 = vector.load %arg3[%c0_3, %c0_4] : memref<1x256xf32, #tpu.memory_space<vmem>>, vector<1x256xf32>
    %4 = vector.broadcast %3 : vector<1x256xf32> to vector<8x256xf32>
    %5 = arith.addf %2, %4 : vector<8x256xf32>
    %cst_5 = arith.constant 0.000000e+00 : f32
    %6 = vector.broadcast %cst_5 : f32 to vector<8x256xf32>
    %7 = arith.maximumf %5, %6 : vector<8x256xf32>
    %8 = arith.truncf %7 : vector<8x256xf32> to vector<8x256xbf16>
    %c0_6 = arith.constant 0 : index
    %c0_7 = arith.constant 0 : index
    %9 = vector.load %arg4[%c0_6, %c0_7] : memref<256x256xbf16, #tpu.memory_space<vmem>>, vector<256x256xbf16>
    %cst_8 = arith.constant dense<0.000000e+00> : vector<8x256xf32>
    %10 = tpu.matmul %8, %9, %cst_8 {dimension_numbers = #tpu.dot_dimension_numbers<[1], [0], [0], [1], [0, 0, 1, 1], [], []>} : vector<8x256xbf16>, vector<256x256xbf16>, vector<8x256xf32> -> vector<8x256xf32>
    %c0_9 = arith.constant 0 : index
    %c0_10 = arith.constant 0 : index
    %11 = vector.load %arg5[%c0_9, %c0_10] : memref<1x256xf32, #tpu.memory_space<vmem>>, vector<1x256xf32>
    %12 = vector.broadcast %11 : vector<1x256xf32> to vector<8x256xf32>
    %13 = arith.addf %10, %12 : vector<8x256xf32>
    %cst_11 = arith.constant 0.000000e+00 : f32
    %14 = vector.broadcast %cst_11 : f32 to vector<8x256xf32>
    %15 = arith.maximumf %13, %14 : vector<8x256xf32>
    %16 = arith.truncf %15 : vector<8x256xf32> to vector<8x256xbf16>
    %c0_12 = arith.constant 0 : index
    %c0_13 = arith.constant 0 : index
    %17 = vector.load %arg6[%c0_12, %c0_13] : memref<256x256xbf16, #tpu.memory_space<vmem>>, vector<256x256xbf16>
    %cst_14 = arith.constant dense<0.000000e+00> : vector<8x256xf32>
    %18 = tpu.matmul %16, %17, %cst_14 {dimension_numbers = #tpu.dot_dimension_numbers<[1], [0], [0], [1], [0, 0, 1, 1], [], []>} : vector<8x256xbf16>, vector<256x256xbf16>, vector<8x256xf32> -> vector<8x256xf32>
    %c0_15 = arith.constant 0 : index
    %c0_16 = arith.constant 0 : index
    %19 = vector.load %arg7[%c0_15, %c0_16] : memref<1x256xf32, #tpu.memory_space<vmem>>, vector<1x256xf32>
    %20 = vector.broadcast %19 : vector<1x256xf32> to vector<8x256xf32>
    %21 = arith.addf %18, %20 : vector<8x256xf32>
    %cst_17 = arith.constant 0.000000e+00 : f32
    %22 = vector.broadcast %cst_17 : f32 to vector<8x256xf32>
    %23 = arith.maximumf %21, %22 : vector<8x256xf32>
    %24 = arith.truncf %23 : vector<8x256xf32> to vector<8x256xbf16>
    %c0_18 = arith.constant 0 : index
    %c0_19 = arith.constant 0 : index
    %25 = vector.load %arg8[%c0_18, %c0_19] : memref<256x256xbf16, #tpu.memory_space<vmem>>, vector<256x256xbf16>
    %cst_20 = arith.constant dense<0.000000e+00> : vector<8x256xf32>
    %26 = tpu.matmul %24, %25, %cst_20 {dimension_numbers = #tpu.dot_dimension_numbers<[1], [0], [0], [1], [0, 0, 1, 1], [], []>} : vector<8x256xbf16>, vector<256x256xbf16>, vector<8x256xf32> -> vector<8x256xf32>
    %c0_21 = arith.constant 0 : index
    %c0_22 = arith.constant 0 : index
    %27 = vector.load %arg9[%c0_21, %c0_22] : memref<1x256xf32, #tpu.memory_space<vmem>>, vector<1x256xf32>
    %28 = vector.broadcast %27 : vector<1x256xf32> to vector<8x256xf32>
    %29 = arith.addf %26, %28 : vector<8x256xf32>
    %cst_23 = arith.constant 0.000000e+00 : f32
    %30 = vector.broadcast %cst_23 : f32 to vector<8x256xf32>
    %31 = arith.maximumf %29, %30 : vector<8x256xf32>
    %32 = arith.truncf %31 : vector<8x256xf32> to vector<8x256xbf16>
    %c0_24 = arith.constant 0 : index
    %c0_25 = arith.constant 0 : index
    %33 = vector.load %arg10[%c0_24, %c0_25] : memref<256x256xbf16, #tpu.memory_space<vmem>>, vector<256x256xbf16>
    %cst_26 = arith.constant dense<0.000000e+00> : vector<8x256xf32>
    %34 = tpu.matmul %32, %33, %cst_26 {dimension_numbers = #tpu.dot_dimension_numbers<[1], [0], [0], [1], [0, 0, 1, 1], [], []>} : vector<8x256xbf16>, vector<256x256xbf16>, vector<8x256xf32> -> vector<8x256xf32>
    %c0_27 = arith.constant 0 : index
    %c0_28 = arith.constant 0 : index
    %35 = vector.load %arg11[%c0_27, %c0_28] : memref<1x256xf32, #tpu.memory_space<vmem>>, vector<1x256xf32>
    %36 = vector.broadcast %35 : vector<1x256xf32> to vector<8x256xf32>
    %37 = arith.addf %34, %36 : vector<8x256xf32>
    %cst_29 = arith.constant 0.000000e+00 : f32
    %38 = vector.broadcast %cst_29 : f32 to vector<8x256xf32>
    %39 = arith.maximumf %37, %38 : vector<8x256xf32>
    %40 = arith.truncf %39 : vector<8x256xf32> to vector<8x256xbf16>
    %c0_30 = arith.constant 0 : index
    %c0_31 = arith.constant 0 : index
    %41 = vector.load %arg12[%c0_30, %c0_31] : memref<256x256xbf16, #tpu.memory_space<vmem>>, vector<256x256xbf16>
    %cst_32 = arith.constant dense<0.000000e+00> : vector<8x256xf32>
    %42 = tpu.matmul %40, %41, %cst_32 {dimension_numbers = #tpu.dot_dimension_numbers<[1], [0], [0], [1], [0, 0, 1, 1], [], []>} : vector<8x256xbf16>, vector<256x256xbf16>, vector<8x256xf32> -> vector<8x256xf32>
    %c0_33 = arith.constant 0 : index
    %c0_34 = arith.constant 0 : index
    %43 = vector.load %arg13[%c0_33, %c0_34] : memref<1x256xf32, #tpu.memory_space<vmem>>, vector<1x256xf32>
    %44 = vector.broadcast %43 : vector<1x256xf32> to vector<8x256xf32>
    %45 = arith.addf %42, %44 : vector<8x256xf32>
    %cst_35 = arith.constant 0.000000e+00 : f32
    %46 = vector.broadcast %cst_35 : f32 to vector<8x256xf32>
    %47 = arith.maximumf %45, %46 : vector<8x256xf32>
    %48 = arith.truncf %47 : vector<8x256xf32> to vector<8x256xbf16>
    %c0_36 = arith.constant 0 : index
    %c0_37 = arith.constant 0 : index
    %49 = vector.load %arg14[%c0_36, %c0_37] : memref<256x256xbf16, #tpu.memory_space<vmem>>, vector<256x256xbf16>
    %cst_38 = arith.constant dense<0.000000e+00> : vector<8x256xf32>
    %50 = tpu.matmul %48, %49, %cst_38 {dimension_numbers = #tpu.dot_dimension_numbers<[1], [0], [0], [1], [0, 0, 1, 1], [], []>} : vector<8x256xbf16>, vector<256x256xbf16>, vector<8x256xf32> -> vector<8x256xf32>
    %c0_39 = arith.constant 0 : index
    %c0_40 = arith.constant 0 : index
    %51 = vector.load %arg15[%c0_39, %c0_40] : memref<1x256xf32, #tpu.memory_space<vmem>>, vector<1x256xf32>
    %52 = vector.broadcast %51 : vector<1x256xf32> to vector<8x256xf32>
    %53 = arith.addf %50, %52 : vector<8x256xf32>
    %cst_41 = arith.constant 0.000000e+00 : f32
    %54 = vector.broadcast %cst_41 : f32 to vector<8x256xf32>
    %55 = arith.maximumf %53, %54 : vector<8x256xf32>
    %56 = arith.truncf %55 : vector<8x256xf32> to vector<8x256xbf16>
    %c0_42 = arith.constant 0 : index
    %c0_43 = arith.constant 0 : index
    %57 = vector.load %arg16[%c0_42, %c0_43] : memref<256x256xbf16, #tpu.memory_space<vmem>>, vector<256x256xbf16>
    %cst_44 = arith.constant dense<0.000000e+00> : vector<8x256xf32>
    %58 = tpu.matmul %56, %57, %cst_44 {dimension_numbers = #tpu.dot_dimension_numbers<[1], [0], [0], [1], [0, 0, 1, 1], [], []>} : vector<8x256xbf16>, vector<256x256xbf16>, vector<8x256xf32> -> vector<8x256xf32>
    %c0_45 = arith.constant 0 : index
    %c0_46 = arith.constant 0 : index
    %59 = vector.load %arg17[%c0_45, %c0_46] : memref<1x256xf32, #tpu.memory_space<vmem>>, vector<1x256xf32>
    %60 = vector.broadcast %59 : vector<1x256xf32> to vector<8x256xf32>
    %61 = arith.addf %58, %60 : vector<8x256xf32>
    %cst_47 = arith.constant 0.000000e+00 : f32
    %62 = vector.broadcast %cst_47 : f32 to vector<8x256xf32>
    %63 = arith.maximumf %61, %62 : vector<8x256xf32>
    %64 = arith.truncf %63 : vector<8x256xf32> to vector<8x256xbf16>
    %c0_48 = arith.constant 0 : index
    %c0_49 = arith.constant 0 : index
    %65 = vector.load %arg18[%c0_48, %c0_49] : memref<256x32xbf16, #tpu.memory_space<vmem>>, vector<256x32xbf16>
    %cst_50 = arith.constant dense<0.000000e+00> : vector<8x32xf32>
    %66 = tpu.matmul %64, %65, %cst_50 {dimension_numbers = #tpu.dot_dimension_numbers<[1], [0], [0], [1], [0, 0, 1, 1], [], []>} : vector<8x256xbf16>, vector<256x32xbf16>, vector<8x32xf32> -> vector<8x32xf32>
    %c0_51 = arith.constant 0 : index
    %c0_52 = arith.constant 0 : index
    %67 = vector.load %arg19[%c0_51, %c0_52] : memref<1x32xf32, #tpu.memory_space<vmem>>, vector<1x32xf32>
    %68 = vector.broadcast %67 : vector<1x32xf32> to vector<8x32xf32>
    %69 = arith.addf %66, %68 : vector<8x32xf32>
    %70 = arith.negf %69 : vector<8x32xf32>
    %71 = math.exp %70 : vector<8x32xf32>
    %cst_53 = arith.constant 1.000000e+00 : f32
    %72 = vector.broadcast %cst_53 : f32 to vector<8x32xf32>
    %73 = arith.addf %72, %71 : vector<8x32xf32>
    %74 = arith.divf %72, %73 : vector<8x32xf32>
    %75 = arith.truncf %74 : vector<8x32xf32> to vector<8x32xbf16>
    %c0_54 = arith.constant 0 : index
    %c0_55 = arith.constant 0 : index
    %76 = vector.load %arg20[%c0_54, %c0_55] : memref<8x32xbf16, #tpu.memory_space<vmem>>, vector<8x32xbf16>
    tpu.vector_store %arg20[%c0_54, %c0_55], %75 {strides = array<i32>} : memref<8x32xbf16, #tpu.memory_space<vmem>>, vector<8x32xbf16>,
    return
  }
  func.func @transform_0(%arg0: i32) -> (i32, i32) {
    %c0_i32 = arith.constant 0 : i32
    %c0_i32_0 = arith.constant 0 : i32
    return %arg0, %c0_i32 : i32, i32
  }
  func.func @transform_1(%arg0: i32) -> (i32, i32) {
    %c0_i32 = arith.constant 0 : i32
    %c0_i32_0 = arith.constant 0 : i32
    %c0_i32_1 = arith.constant 0 : i32
    return %c0_i32, %c0_i32_0 : i32, i32
  }
  func.func @transform_2(%arg0: i32) -> (i32, i32) {
    %c0_i32 = arith.constant 0 : i32
    %c0_i32_0 = arith.constant 0 : i32
    %c0_i32_1 = arith.constant 0 : i32
    return %c0_i32, %c0_i32_0 : i32, i32
  }
  func.func @transform_3(%arg0: i32) -> (i32, i32) {
    %c0_i32 = arith.constant 0 : i32
    %c0_i32_0 = arith.constant 0 : i32
    %c0_i32_1 = arith.constant 0 : i32
    return %c0_i32, %c0_i32_0 : i32, i32
  }
  func.func @transform_4(%arg0: i32) -> (i32, i32) {
    %c0_i32 = arith.constant 0 : i32
    %c0_i32_0 = arith.constant 0 : i32
    %c0_i32_1 = arith.constant 0 : i32
    return %c0_i32, %c0_i32_0 : i32, i32
  }
  func.func @transform_5(%arg0: i32) -> (i32, i32) {
    %c0_i32 = arith.constant 0 : i32
    %c0_i32_0 = arith.constant 0 : i32
    %c0_i32_1 = arith.constant 0 : i32
    return %c0_i32, %c0_i32_0 : i32, i32
  }
  func.func @transform_6(%arg0: i32) -> (i32, i32) {
    %c0_i32 = arith.constant 0 : i32
    %c0_i32_0 = arith.constant 0 : i32
    %c0_i32_1 = arith.constant 0 : i32
    return %c0_i32, %c0_i32_0 : i32, i32
  }
  func.func @transform_7(%arg0: i32) -> (i32, i32) {
    %c0_i32 = arith.constant 0 : i32
    %c0_i32_0 = arith.constant 0 : i32
    %c0_i32_1 = arith.constant 0 : i32
    return %c0_i32, %c0_i32_0 : i32, i32
  }
  func.func @transform_8(%arg0: i32) -> (i32, i32) {
    %c0_i32 = arith.constant 0 : i32
    %c0_i32_0 = arith.constant 0 : i32
    %c0_i32_1 = arith.constant 0 : i32
    return %c0_i32, %c0_i32_0 : i32, i32
  }
  func.func @transform_9(%arg0: i32) -> (i32, i32) {
    %c0_i32 = arith.constant 0 : i32
    %c0_i32_0 = arith.constant 0 : i32
    %c0_i32_1 = arith.constant 0 : i32
    return %c0_i32, %c0_i32_0 : i32, i32
  }
  func.func @transform_10(%arg0: i32) -> (i32, i32) {
    %c0_i32 = arith.constant 0 : i32
    %c0_i32_0 = arith.constant 0 : i32
    %c0_i32_1 = arith.constant 0 : i32
    return %c0_i32, %c0_i32_0 : i32, i32
  }
  func.func @transform_11(%arg0: i32) -> (i32, i32) {
    %c0_i32 = arith.constant 0 : i32
    %c0_i32_0 = arith.constant 0 : i32
    %c0_i32_1 = arith.constant 0 : i32
    return %c0_i32, %c0_i32_0 : i32, i32
  }
  func.func @transform_12(%arg0: i32) -> (i32, i32) {
    %c0_i32 = arith.constant 0 : i32
    %c0_i32_0 = arith.constant 0 : i32
    %c0_i32_1 = arith.constant 0 : i32
    return %c0_i32, %c0_i32_0 : i32, i32
  }
  func.func @transform_13(%arg0: i32) -> (i32, i32) {
    %c0_i32 = arith.constant 0 : i32
    %c0_i32_0 = arith.constant 0 : i32
    %c0_i32_1 = arith.constant 0 : i32
    return %c0_i32, %c0_i32_0 : i32, i32
  }
  func.func @transform_14(%arg0: i32) -> (i32, i32) {
    %c0_i32 = arith.constant 0 : i32
    %c0_i32_0 = arith.constant 0 : i32
    %c0_i32_1 = arith.constant 0 : i32
    return %c0_i32, %c0_i32_0 : i32, i32
  }
  func.func @transform_15(%arg0: i32) -> (i32, i32) {
    %c0_i32 = arith.constant 0 : i32
    %c0_i32_0 = arith.constant 0 : i32
    %c0_i32_1 = arith.constant 0 : i32
    return %c0_i32, %c0_i32_0 : i32, i32
  }
  func.func @transform_16(%arg0: i32) -> (i32, i32) {
    %c0_i32 = arith.constant 0 : i32
    %c0_i32_0 = arith.constant 0 : i32
    %c0_i32_1 = arith.constant 0 : i32
    return %c0_i32, %c0_i32_0 : i32, i32
  }
  func.func @transform_17(%arg0: i32) -> (i32, i32) {
    %c0_i32 = arith.constant 0 : i32
    %c0_i32_0 = arith.constant 0 : i32
    %c0_i32_1 = arith.constant 0 : i32
    return %c0_i32, %c0_i32_0 : i32, i32
  }
  func.func @transform_18(%arg0: i32) -> (i32, i32) {
    %c0_i32 = arith.constant 0 : i32
    %c0_i32_0 = arith.constant 0 : i32
    %c0_i32_1 = arith.constant 0 : i32
    return %c0_i32, %c0_i32_0 : i32, i32
  }
  func.func @transform_19(%arg0: i32) -> (i32, i32) {
    %c0_i32 = arith.constant 0 : i32
    %c0_i32_0 = arith.constant 0 : i32
    return %arg0, %c0_i32 : i32, i32
  }
}

</mosaic_0001>

<llo_original>
// kernel: tpu_custom_call.1
$region0: #{tpu_custom_call.1}
  #allocation0 [shape = 'u32[]', space=smem, size = 0x4, offset = 0x4, fixed_abs, tag = 'smem constant byte address 0x4 - core index']
  #allocation1 [shape = 'u32[72,128]{1,0:T(1,128)}', space=vmem, size = 0x9000, scoped, tag = 'internal scratch']
  %s0 = inlined_call_operand.vmem [shape: bf16[8,32], index: 0, kind: input, shape index: {}]
  %s1 = inlined_call_operand.vmem [shape: bf16[32,256], index: 1, kind: input, shape index: {}]
  %s2 = inlined_call_operand.vmem [shape: f32[1,256], index: 2, kind: input, shape index: {}]
  %s3 = inlined_call_operand.hbm [shape: bf16[256,256], index: 3, kind: input, shape index: {}]
  %s4 = inlined_call_operand.vmem [shape: f32[1,256], index: 4, kind: input, shape index: {}]
  %s5 = inlined_call_operand.hbm [shape: bf16[256,256], index: 5, kind: input, shape index: {}]
  %s6 = inlined_call_operand.vmem [shape: f32[1,256], index: 6, kind: input, shape index: {}]
  %s7 = inlined_call_operand.hbm [shape: bf16[256,256], index: 7, kind: input, shape index: {}]
  %s8 = inlined_call_operand.vmem [shape: f32[1,256], index: 8, kind: input, shape index: {}]
  %s9 = inlined_call_operand.hbm [shape: bf16[256,256], index: 9, kind: input, shape index: {}]
  %s10 = inlined_call_operand.vmem [shape: f32[1,256], index: 10, kind: input, shape index: {}]
  %s11 = inlined_call_operand.hbm [shape: bf16[256,256], index: 11, kind: input, shape index: {}]
  %s12 = inlined_call_operand.vmem [shape: f32[1,256], index: 12, kind: input, shape index: {}]
  %s13 = inlined_call_operand.hbm [shape: bf16[256,256], index: 13, kind: input, shape index: {}]
  %s14 = inlined_call_operand.vmem [shape: f32[1,256], index: 14, kind: input, shape index: {}]
  %s15 = inlined_call_operand.hbm [shape: bf16[256,256], index: 15, kind: input, shape index: {}]
  %s16 = inlined_call_operand.vmem [shape: f32[1,256], index: 16, kind: input, shape index: {}]
  %s17 = inlined_call_operand.vmem [shape: bf16[256,32], index: 17, kind: input, shape index: {}]
  %s18 = inlined_call_operand.vmem [shape: f32[1,32], index: 18, kind: input, shape index: {}]
  %s19 = inlined_call_operand.hbm [shape: bf16[8,32], index: 19, kind: output, shape index: {}]
  %s20 = sld [smem:[#allocation0]]
  $region114: #{tpu_custom_call.1} parent=0
    _
  %s22 = ssub.s32 1, %s20
  %s23 = scalar_select 0, %s22, %s20
  $region1: #{tpu_custom_call.1} parent=0
    #allocation2 [shape = 'u8[131072]{0}', space=vmem, size = 0x20000, scoped, tag = 'input window, operand 3, single buffered']
    #allocation3 [shape = 's32[1]{0}', space=sflag, size = 0x4, scoped, tag = 'scoped memory for tpu_custom_call.1']
    #allocation4 [shape = 's32[1]{0}', space=sflag, size = 0x4, scoped, tag = 'scoped memory for tpu_custom_call.1']
    #allocation5 [shape = 'u8[131072]{0}', space=vmem, size = 0x20000, scoped, tag = 'input window, operand 5, single buffered']
    #allocation6 [shape = 's32[1]{0}', space=sflag, size = 0x4, scoped, tag = 'scoped memory for tpu_custom_call.1']
    #allocation7 [shape = 'u8[131072]{0}', space=vmem, size = 0x20000, scoped, tag = 'input window, operand 7, single buffered']
    #allocation8 [shape = 'u8[131072]{0}', space=vmem, size = 0x20000, scoped, tag = 'input window, operand 9, single buffered']
    #allocation9 [shape = 's32[1]{0}', space=sflag, size = 0x4, scoped, tag = 'scoped memory for tpu_custom_call.1']
    #allocation10 [shape = 'u8[131072]{0}', space=vmem, size = 0x20000, scoped, tag = 'input window, operand 11, single buffered']
    #allocation11 [shape = 'u8[131072]{0}', space=vmem, size = 0x20000, scoped, tag = 'input window, operand 13, single buffered']
    #allocation12 [shape = 's32[1]{0}', space=sflag, size = 0x4, scoped, tag = 'scoped memory for tpu_custom_call.1']
    #allocation13 [shape = 'u8[131072]{0}', space=vmem, size = 0x20000, scoped, tag = 'input window, operand 15, single buffered']
    #allocation14 [shape = 'u8[2048]{0}', space=vmem, size = 0x800, scoped, tag = 'output window, operand 0, single buffered']
    %24 = vsyncpa [#allocation3], 0
    %25 = vsyncpa [#allocation6], 0
    %26 = vsyncpa [#allocation9], 0
    %27 = vsyncpa [#allocation12], 0
    %28 = vsyncpa [#allocation4], 0
    // Predicated region
    $region2: #{tpu_custom_call.1} parent=1 // pred_check
      _
    $region3: #{tpu_custom_call.1} parent=1 // pred_check_branch
      %30 = sbr.rel (0) target = $region5
    $region4: #{tpu_custom_call.1} parent=1 // pred_region
      _
    $region5: #{tpu_custom_call.1} parent=1 // pred_fallthru
      _
    // Predicated region
    $region6: #{tpu_custom_call.1} parent=1 // pred_check
      _
    $region7: #{tpu_custom_call.1} parent=1 // pred_check_branch
      %32 = sbr.rel (0) target = $region9
    $region8: #{tpu_custom_call.1} parent=1 // pred_region
      _
    $region9: #{tpu_custom_call.1} parent=1 // pred_fallthru
      _
    // Predicated region
    $region10: #{tpu_custom_call.1} parent=1 // pred_check
      _
    $region11: #{tpu_custom_call.1} parent=1 // pred_check_branch
      %34 = sbr.rel (0) target = $region13
    $region12: #{tpu_custom_call.1} parent=1 // pred_region
      _
    $region13: #{tpu_custom_call.1} parent=1 // pred_fallthru
      _
    // Predicated region
    $region14: #{tpu_custom_call.1} parent=1 // pred_check
      _
    $region15: #{tpu_custom_call.1} parent=1 // pred_check_branch
      %36 = sbr.rel (0) target = $region17
    $region16: #{tpu_custom_call.1} parent=1 // pred_region
      %38 = vsyncadd [#allocation3], 0
      %s39 = sshll.u32 %s3, 4
      %s40 = int_to_ptr.hbm [resolvable:$true] %s39
      %s41 = sshll.u32 [#allocation2], 4
      %s42 = int_to_ptr.vmem [resolvable:$true] %s41
      %47 = dma.hbm_to_vmem [thread:$0]  %s40, 4096, %s42, [#allocation3], 128, 128, 8
    $region17: #{tpu_custom_call.1} parent=1 // pred_fallthru
      _
    // Predicated region
    $region18: #{tpu_custom_call.1} parent=1 // pred_check
      _
    $region19: #{tpu_custom_call.1} parent=1 // pred_check_branch
      %49 = sbr.rel (0) target = $region21
    $region20: #{tpu_custom_call.1} parent=1 // pred_region
      _
    $region21: #{tpu_custom_call.1} parent=1 // pred_fallthru
      _
    // Predicated region
    $region22: #{tpu_custom_call.1} parent=1 // pred_check
      _
    $region23: #{tpu_custom_call.1} parent=1 // pred_check_branch
      %51 = sbr.rel (0) target = $region25
    $region24: #{tpu_custom_call.1} parent=1 // pred_region
      %53 = vsyncadd [#allocation6], 0
      %s54 = sshll.u32 %s5, 4
      %s55 = int_to_ptr.hbm [resolvable:$true] %s54
      %s56 = sshll.u32 [#allocation5], 4
      %s57 = int_to_ptr.vmem [resolvable:$true] %s56
      %62 = dma.hbm_to_vmem [thread:$0]  %s55, 4096, %s57, [#allocation6], 128, 128, 8
    $region25: #{tpu_custom_call.1} parent=1 // pred_fallthru
      _
    // Predicated region
    $region26: #{tpu_custom_call.1} parent=1 // pred_check
      _
    $region27: #{tpu_custom_call.1} parent=1 // pred_check_branch
      %64 = sbr.rel (0) target = $region29
    $region28: #{tpu_custom_call.1} parent=1 // pred_region
      _
    $region29: #{tpu_custom_call.1} parent=1 // pred_fallthru
      _
    // Predicated region
    $region30: #{tpu_custom_call.1} parent=1 // pred_check
      _
    $region31: #{tpu_custom_call.1} parent=1 // pred_check_branch
      %66 = sbr.rel (0) target = $region33
    $region32: #{tpu_custom_call.1} parent=1 // pred_region
      %68 = vsyncadd [#allocation6], 0
      %s69 = sshll.u32 %s7, 4
      %s70 = int_to_ptr.hbm [resolvable:$true] %s69
      %s71 = sshll.u32 [#allocation7], 4
      %s72 = int_to_ptr.vmem [resolvable:$true] %s71
      %77 = dma.hbm_to_vmem [thread:$0]  %s70, 4096, %s72, [#allocation6], 128, 128, 8
    $region33: #{tpu_custom_call.1} parent=1 // pred_fallthru
      _
    // Predicated region
    $region34: #{tpu_custom_call.1} parent=1 // pred_check
      _
    $region35: #{tpu_custom_call.1} parent=1 // pred_check_branch
      %79 = sbr.rel (0) target = $region37
    $region36: #{tpu_custom_call.1} parent=1 // pred_region
      _
    $region37: #{tpu_custom_call.1} parent=1 // pred_fallthru
      _
    // Predicated region
    $region38: #{tpu_custom_call.1} parent=1 // pred_check
      _
    $region39: #{tpu_custom_call.1} parent=1 // pred_check_branch
      %81 = sbr.rel (0) target = $region41
    $region40: #{tpu_custom_call.1} parent=1 // pred_region
      %83 = vsyncadd [#allocation9], 0
      %s84 = sshll.u32 %s9, 4
      %s85 = int_to_ptr.hbm [resolvable:$true] %s84
      %s86 = sshll.u32 [#allocation8], 4
      %s87 = int_to_ptr.vmem [resolvable:$true] %s86
      %92 = dma.hbm_to_vmem [thread:$0]  %s85, 4096, %s87, [#allocation9], 128, 128, 8
    $region41: #{tpu_custom_call.1} parent=1 // pred_fallthru
      _
    // Predicated region
    $region42: #{tpu_custom_call.1} parent=1 // pred_check
      _
    $region43: #{tpu_custom_call.1} parent=1 // pred_check_branch
      %94 = sbr.rel (0) target = $region45
    $region44: #{tpu_custom_call.1} parent=1 // pred_region
      _
    $region45: #{tpu_custom_call.1} parent=1 // pred_fallthru
      _
    // Predicated region
    $region46: #{tpu_custom_call.1} parent=1 // pred_check
      _
    $region47: #{tpu_custom_call.1} parent=1 // pred_check_branch
      %96 = sbr.rel (0) target = $region49
    $region48: #{tpu_custom_call.1} parent=1 // pred_region
      %98 = vsyncadd [#allocation9], 0
      %s99 = sshll.u32 %s11, 4
      %s100 = int_to_ptr.hbm [resolvable:$true] %s99
      %s101 = sshll.u32 [#allocation10], 4
      %s102 = int_to_ptr.vmem [resolvable:$true] %s101
      %107 = dma.hbm_to_vmem [thread:$0]  %s100, 4096, %s102, [#allocation9], 128, 128, 8
    $region49: #{tpu_custom_call.1} parent=1 // pred_fallthru
      _
    // Predicated region
    $region50: #{tpu_custom_call.1} parent=1 // pred_check
      _
    $region51: #{tpu_custom_call.1} parent=1 // pred_check_branch
      %109 = sbr.rel (0) target = $region53
    $region52: #{tpu_custom_call.1} parent=1 // pred_region
      _
    $region53: #{tpu_custom_call.1} parent=1 // pred_fallthru
      _
    // Predicated region
    $region54: #{tpu_custom_call.1} parent=1 // pred_check
      _
    $region55: #{tpu_custom_call.1} parent=1 // pred_check_branch
      %111 = sbr.rel (0) target = $region57
    $region56: #{tpu_custom_call.1} parent=1 // pred_region
      %113 = vsyncadd [#allocation12], 0
      %s114 = sshll.u32 %s13, 4
      %s115 = int_to_ptr.hbm [resolvable:$true] %s114
      %s116 = sshll.u32 [#allocation11], 4
      %s117 = int_to_ptr.vmem [resolvable:$true] %s116
      %122 = dma.hbm_to_vmem [thread:$0]  %s115, 4096, %s117, [#allocation12], 128, 128, 8
    $region57: #{tpu_custom_call.1} parent=1 // pred_fallthru
      _
    // Predicated region
    $region58: #{tpu_custom_call.1} parent=1 // pred_check
      _
    $region59: #{tpu_custom_call.1} parent=1 // pred_check_branch
      %124 = sbr.rel (0) target = $region61
    $region60: #{tpu_custom_call.1} parent=1 // pred_region
      _
    $region61: #{tpu_custom_call.1} parent=1 // pred_fallthru
      _
    // Predicated region
    $region62: #{tpu_custom_call.1} parent=1 // pred_check
      _
    $region63: #{tpu_custom_call.1} parent=1 // pred_check_branch
      %126 = sbr.rel (0) target = $region65
    $region64: #{tpu_custom_call.1} parent=1 // pred_region
      %128 = vsyncadd [#allocation12], 0
      %s129 = sshll.u32 %s15, 4
      %s130 = int_to_ptr.hbm [resolvable:$true] %s129
      %s131 = sshll.u32 [#allocation13], 4
      %s132 = int_to_ptr.vmem [resolvable:$true] %s131
      %137 = dma.hbm_to_vmem [thread:$0]  %s130, 4096, %s132, [#allocation12], 128, 128, 8
    $region65: #{tpu_custom_call.1} parent=1 // pred_fallthru
      _
    // Predicated region
    $region66: #{tpu_custom_call.1} parent=1 // pred_check
      _
    $region67: #{tpu_custom_call.1} parent=1 // pred_check_branch
      %139 = sbr.rel (0) target = $region69
    $region68: #{tpu_custom_call.1} parent=1 // pred_region
      _
    $region69: #{tpu_custom_call.1} parent=1 // pred_fallthru
      _
    // Predicated region
    $region70: #{tpu_custom_call.1} parent=1 // pred_check
      _
    $region71: #{tpu_custom_call.1} parent=1 // pred_check_branch
      %141 = sbr.rel (0) target = $region73
    $region72: #{tpu_custom_call.1} parent=1 // pred_region
      _
    $region73: #{tpu_custom_call.1} parent=1 // pred_fallthru
      _
    // Predicated region
    $region74: #{tpu_custom_call.1} parent=1 // pred_check
      _
    $region75: #{tpu_custom_call.1} parent=1 // pred_check_branch
      %143 = sbr.rel (0) target = $region77
    $region76: #{tpu_custom_call.1} parent=1 // pred_region
      _
    $region77: #{tpu_custom_call.1} parent=1 // pred_fallthru
      _
    // Predicated region
    $region78: #{tpu_custom_call.1} parent=1 // pred_check
      _
    $region79: #{tpu_custom_call.1} parent=1 // pred_check_branch
      %145 = sbr.rel (0) target = $region81
    $region80: #{tpu_custom_call.1} parent=1 // pred_region
      %147 = dma.done [#allocation3], 4096
    $region81: #{tpu_custom_call.1} parent=1 // pred_fallthru
      _
    // Predicated region
    $region82: #{tpu_custom_call.1} parent=1 // pred_check
      _
    $region83: #{tpu_custom_call.1} parent=1 // pred_check_branch
      %149 = sbr.rel (0) target = $region85
    $region84: #{tpu_custom_call.1} parent=1 // pred_region
      %151 = dma.done [#allocation6], 4096
    $region85: #{tpu_custom_call.1} parent=1 // pred_fallthru
      _
    // Predicated region
    $region86: #{tpu_custom_call.1} parent=1 // pred_check
      _
    $region87: #{tpu_custom_call.1} parent=1 // pred_check_branch
      %153 = sbr.rel (0) target = $region89
    $region88: #{tpu_custom_call.1} parent=1 // pred_region
      %155 = dma.done [#allocation6], 4096
    $region89: #{tpu_custom_call.1} parent=1 // pred_fallthru
      _
    // Predicated region
    $region90: #{tpu_custom_call.1} parent=1 // pred_check
      _
    $region91: #{tpu_custom_call.1} parent=1 // pred_check_branch
      %157 = sbr.rel (0) target = $region93
    $region92: #{tpu_custom_call.1} parent=1 // pred_region
      %159 = dma.done [#allocation9], 4096
    $region93: #{tpu_custom_call.1} parent=1 // pred_fallthru
      _
    // Predicated region
    $region94: #{tpu_custom_call.1} parent=1 // pred_check
      _
    $region95: #{tpu_custom_call.1} parent=1 // pred_check_branch
      %161 = sbr.rel (0) target = $region97
    $region96: #{tpu_custom_call.1} parent=1 // pred_region
      %163 = dma.done [#allocation9], 4096
    $region97: #{tpu_custom_call.1} parent=1 // pred_fallthru
      _
    // Predicated region
    $region98: #{tpu_custom_call.1} parent=1 // pred_check
      _
    $region99: #{tpu_custom_call.1} parent=1 // pred_check_branch
      %165 = sbr.rel (0) target = $region101
    $region100: #{tpu_custom_call.1} parent=1 // pred_region
      %167 = dma.done [#allocation12], 4096
    $region101: #{tpu_custom_call.1} parent=1 // pred_fallthru
      _
    // Predicated region
    $region102: #{tpu_custom_call.1} parent=1 // pred_check
      _
    $region103: #{tpu_custom_call.1} parent=1 // pred_check_branch
      %169 = sbr.rel (0) target = $region105
    $region104: #{tpu_custom_call.1} parent=1 // pred_region
      %171 = dma.done [#allocation12], 4096
    $region105: #{tpu_custom_call.1} parent=1 // pred_fallthru
      _
    %v173 = vld [vmem:[%s0] sm:$0xf]
    %v174 = vld [vmem:[%s1] sm:$0xff]
    %v175 = vld [vmem:[%s1 + $0x8] sm:$0xff]
    %v176 = vld [vmem:[%s1 + $0x10] sm:$0xff]
    %v177 = vld [vmem:[%s1 + $0x18] sm:$0xff]
    %v178 = vld [vmem:[%s2] sm:$0x3]
    %v180 = vperm.slane %v178, 0
    %v181 = vperm.slane %v178, 1
    %v188 = vunpack.c.l.b16 %v174
    %v189 = vunpack.c.h.b16 %v174
    %v190 = vunpack.c.l.b16 %v175
    %v191 = vunpack.c.h.b16 %v175
    %v192 = vunpack.c.l.b16 %v176
    %v193 = vunpack.c.h.b16 %v176
    %v194 = vunpack.c.l.b16 %v177
    %v195 = vunpack.c.h.b16 %v177
    %v196 = vpack.c.b16 %v190, %v188
    %v197 = vpack.c.b16 %v191, %v189
    %v198 = vpack.c.b16 %v194, %v192
    %v199 = vpack.c.b16 %v195, %v193
    %vm204 = vcmask 261120
    %v206 = vsel %vm204, %v173, 0
    %208 = vmatpush.bf16.msra.mxu0 0
    %209 = vmatpush.bf16.msra.mxu0 0
    %210 = vmatpush.bf16.msra.mxu0 0
    %211 = vmatpush.bf16.msra.mxu0 0
    %212 = vmatpush.bf16.msra.mxu0 0
    %213 = vmatpush.bf16.msra.mxu0 0
    %214 = vmatpush.bf16.msra.mxu0 %v198
    %215 = vmatpush.bf16.msra.mxu0 %v196
    %216 = vmatmul.bf16.gmra.mxu0 %v206
    %v217 = vpop.f32.mrf.mxu0
    %v218 = vadd.f32 %v180, %v217
    %v219 = vpop.f32.mrf.mxu0
    %220 = vdwg.mxu0
    %221 = vmatpush.bf16.msra.mxu0 0
    %222 = vmatpush.bf16.msra.mxu0 0
    %223 = vmatpush.bf16.msra.mxu0 0
    %224 = vmatpush.bf16.msra.mxu0 0
    %225 = vmatpush.bf16.msra.mxu0 0
    %226 = vmatpush.bf16.msra.mxu0 0
    %227 = vmatpush.bf16.msra.mxu0 %v199
    %228 = vmatpush.bf16.msra.mxu0 %v197
    %229 = vmatmul.bf16.gmra.mxu0 %v206
    %v230 = vpop.f32.mrf.mxu0
    %v231 = vadd.f32 %v181, %v230
    %v232 = vpop.f32.mrf.mxu0
    %233 = vdwg.mxu0
    %v234 = vmax.f32 %v218, 0.0
    %v235 = vmax.f32 %v231, 0.0
    %v236 = vpack.c.bf16 %v234, %v234
    %v237 = vpack.c.bf16 %v235, %v235
    %v238 = vld [vmem:[#allocation2] sm:$0xff]
    %v239 = vld [vmem:[#allocation2 + $0x8] sm:$0xff]
    %v240 = vld [vmem:[#allocation2 + $0x10] sm:$0xff]
    %v241 = vld [vmem:[#allocation2 + $0x18] sm:$0xff]
    %v242 = vld [vmem:[#allocation2 + $0x20] sm:$0xff]
    %v243 = vld [vmem:[#allocation2 + $0x28] sm:$0xff]
    %v244 = vld [vmem:[#allocation2 + $0x30] sm:$0xff]
    %v245 = vld [vmem:[#allocation2 + $0x38] sm:$0xff]
    %v246 = vld [vmem:[#allocation2 + $0x40] sm:$0xff]
    %v247 = vld [vmem:[#allocation2 + $0x48] sm:$0xff]
    %v248 = vld [vmem:[#allocation2 + $0x50] sm:$0xff]
    %v249 = vld [vmem:[#allocation2 + $0x58] sm:$0xff]
    %v250 = vld [vmem:[#allocation2 + $0x60] sm:$0xff]
    %v251 = vld [vmem:[#allocation2 + $0x68] sm:$0xff]
    %v252 = vld [vmem:[#allocation2 + $0x70] sm:$0xff]
    %v253 = vld [vmem:[#allocation2 + $0x78] sm:$0xff]
    %v254 = vld [vmem:[#allocation2 + $0x80] sm:$0xff]
    %v255 = vld [vmem:[#allocation2 + $0x88] sm:$0xff]
    %v256 = vld [vmem:[#allocation2 + $0x90] sm:$0xff]
    %v257 = vld [vmem:[#allocation2 + $0x98] sm:$0xff]
    %v258 = vld [vmem:[#allocation2 + $0xa0] sm:$0xff]
    %v259 = vld [vmem:[#allocation2 + $0xa8] sm:$0xff]
    %v260 = vld [vmem:[#allocation2 + $0xb0] sm:$0xff]
    %v261 = vld [vmem:[#allocation2 + $0xb8] sm:$0xff]
    %v262 = vld [vmem:[#allocation2 + $0xc0] sm:$0xff]
    %v263 = vld [vmem:[#allocation2 + $0xc8] sm:$0xff]
    %v264 = vld [vmem:[#allocation2 + $0xd0] sm:$0xff]
    %v265 = vld [vmem:[#allocation2 + $0xd8] sm:$0xff]
    %v266 = vld [vmem:[#allocation2 + $0xe0] sm:$0xff]
    %v267 = vld [vmem:[#allocation2 + $0xe8] sm:$0xff]
    %v268 = vld [vmem:[#allocation2 + $0xf0] sm:$0xff]
    %v269 = vld [vmem:[#allocation2 + $0xf8] sm:$0xff]
    %v270 = vld [vmem:[%s4] sm:$0x3]
    %v272 = vperm.slane %v270, 0
    %v273 = vperm.slane %v270, 1
    %v308 = vunpack.c.l.b16 %v238
    %v309 = vunpack.c.h.b16 %v238
    %v310 = vunpack.c.l.b16 %v239
    %v311 = vunpack.c.h.b16 %v239
    %v312 = vunpack.c.l.b16 %v240
    %v313 = vunpack.c.h.b16 %v240
    %v314 = vunpack.c.l.b16 %v241
    %v315 = vunpack.c.h.b16 %v241
    %v316 = vunpack.c.l.b16 %v242
    %v317 = vunpack.c.h.b16 %v242
    %v318 = vunpack.c.l.b16 %v243
    %v319 = vunpack.c.h.b16 %v243
    %v320 = vunpack.c.l.b16 %v244
    %v321 = vunpack.c.h.b16 %v244
    %v322 = vunpack.c.l.b16 %v245
    %v323 = vunpack.c.h.b16 %v245
    %v324 = vunpack.c.l.b16 %v246
    %v325 = vunpack.c.h.b16 %v246
    %v326 = vunpack.c.l.b16 %v247
    %v327 = vunpack.c.h.b16 %v247
    %v328 = vunpack.c.l.b16 %v248
    %v329 = vunpack.c.h.b16 %v248
    %v330 = vunpack.c.l.b16 %v249
    %v331 = vunpack.c.h.b16 %v249
    %v332 = vunpack.c.l.b16 %v250
    %v333 = vunpack.c.h.b16 %v250
    %v334 = vunpack.c.l.b16 %v251
    %v335 = vunpack.c.h.b16 %v251
    %v336 = vunpack.c.l.b16 %v252
    %v337 = vunpack.c.h.b16 %v252
    %v338 = vunpack.c.l.b16 %v253
    %v339 = vunpack.c.h.b16 %v253
    %v340 = vunpack.c.l.b16 %v254
    %v341 = vunpack.c.h.b16 %v254
    %v342 = vunpack.c.l.b16 %v255
    %v343 = vunpack.c.h.b16 %v255
    %v344 = vunpack.c.l.b16 %v256
    %v345 = vunpack.c.h.b16 %v256
    %v346 = vunpack.c.l.b16 %v257
    %v347 = vunpack.c.h.b16 %v257
    %v348 = vunpack.c.l.b16 %v258
    %v349 = vunpack.c.h.b16 %v258
    %v350 = vunpack.c.l.b16 %v259
    %v351 = vunpack.c.h.b16 %v259
    %v352 = vunpack.c.l.b16 %v260
    %v353 = vunpack.c.h.b16 %v260
    %v354 = vunpack.c.l.b16 %v261
    %v355 = vunpack.c.h.b16 %v261
    %v356 = vunpack.c.l.b16 %v262
    %v357 = vunpack.c.h.b16 %v262
    %v358 = vunpack.c.l.b16 %v263
    %v359 = vunpack.c.h.b16 %v263
    %v360 = vunpack.c.l.b16 %v264
    %v361 = vunpack.c.h.b16 %v264
    %v362 = vunpack.c.l.b16 %v265
    %v363 = vunpack.c.h.b16 %v265
    %v364 = vunpack.c.l.b16 %v266
    %v365 = vunpack.c.h.b16 %v266
    %v366 = vunpack.c.l.b16 %v267
    %v367 = vunpack.c.h.b16 %v267
    %v368 = vunpack.c.l.b16 %v268
    %v369 = vunpack.c.h.b16 %v268
    %v370 = vunpack.c.l.b16 %v269
    %v371 = vunpack.c.h.b16 %v269
    %v372 = vpack.c.b16 %v310, %v308
    %v373 = vpack.c.b16 %v311, %v309
    %v374 = vpack.c.b16 %v314, %v312
    %v375 = vpack.c.b16 %v315, %v313
    %v376 = vpack.c.b16 %v318, %v316
    %v377 = vpack.c.b16 %v319, %v317
    %v378 = vpack.c.b16 %v322, %v320
    %v379 = vpack.c.b16 %v323, %v321
    %v380 = vpack.c.b16 %v326, %v324
    %v381 = vpack.c.b16 %v327, %v325
    %v382 = vpack.c.b16 %v330, %v328
    %v383 = vpack.c.b16 %v331, %v329
    %v384 = vpack.c.b16 %v334, %v332
    %v385 = vpack.c.b16 %v335, %v333
    %v386 = vpack.c.b16 %v338, %v336
    %v387 = vpack.c.b16 %v339, %v337
    %v388 = vpack.c.b16 %v342, %v340
    %v389 = vpack.c.b16 %v343, %v341
    %v390 = vpack.c.b16 %v346, %v344
    %v391 = vpack.c.b16 %v347, %v345
    %v392 = vpack.c.b16 %v350, %v348
    %v393 = vpack.c.b16 %v351, %v349
    %v394 = vpack.c.b16 %v354, %v352
    %v395 = vpack.c.b16 %v355, %v353
    %v396 = vpack.c.b16 %v358, %v356
    %v397 = vpack.c.b16 %v359, %v357
    %v398 = vpack.c.b16 %v362, %v360
    %v399 = vpack.c.b16 %v363, %v361
    %v400 = vpack.c.b16 %v366, %v364
    %v401 = vpack.c.b16 %v367, %v365
    %v402 = vpack.c.b16 %v370, %v368
    %v403 = vpack.c.b16 %v371, %v369
    %436 = vmatpush.bf16.msra.mxu0 %v386
    %437 = vmatpush.bf16.msra.mxu0 %v384
    %438 = vmatpush.bf16.msra.mxu0 %v382
    %439 = vmatpush.bf16.msra.mxu0 %v380
    %440 = vmatpush.bf16.msra.mxu0 %v378
    %441 = vmatpush.bf16.msra.mxu0 %v376
    %442 = vmatpush.bf16.msra.mxu0 %v374
    %443 = vmatpush.bf16.msra.mxu0 %v372
    %444 = vmatmul.bf16.gmra.mxu0 %v236
    %v445 = vpop.f32.mrf.mxu0
    %v446 = vadd.f32 %v272, %v445
    %v447 = vpop.f32.mrf.mxu0
    %448 = vdwg.mxu0
    %449 = vmatpush.bf16.msra.mxu0 %v402
    %450 = vmatpush.bf16.msra.mxu0 %v400
    %451 = vmatpush.bf16.msra.mxu0 %v398
    %452 = vmatpush.bf16.msra.mxu0 %v396
    %453 = vmatpush.bf16.msra.mxu0 %v394
    %454 = vmatpush.bf16.msra.mxu0 %v392
    %455 = vmatpush.bf16.msra.mxu0 %v390
    %456 = vmatpush.bf16.msra.mxu0 %v388
    %457 = vmatmul.bf16.gmra.mxu0 %v237
    %v458 = vpop.f32.mrf.mxu0
    %v459 = vadd.f32 %v446, %v458
    %v460 = vpop.f32.mrf.mxu0
    %461 = vdwg.mxu0
    %462 = vmatpush.bf16.msra.mxu0 %v387
    %463 = vmatpush.bf16.msra.mxu0 %v385
    %464 = vmatpush.bf16.msra.mxu0 %v383
    %465 = vmatpush.bf16.msra.mxu0 %v381
    %466 = vmatpush.bf16.msra.mxu0 %v379
    %467 = vmatpush.bf16.msra.mxu0 %v377
    %468 = vmatpush.bf16.msra.mxu0 %v375
    %469 = vmatpush.bf16.msra.mxu0 %v373
    %470 = vmatmul.bf16.gmra.mxu0 %v236
    %v471 = vpop.f32.mrf.mxu0
    %v472 = vadd.f32 %v273, %v471
    %v473 = vpop.f32.mrf.mxu0
    %474 = vdwg.mxu0
    %475 = vmatpush.bf16.msra.mxu0 %v403
    %476 = vmatpush.bf16.msra.mxu0 %v401
    %477 = vmatpush.bf16.msra.mxu0 %v399
    %478 = vmatpush.bf16.msra.mxu0 %v397
    %479 = vmatpush.bf16.msra.mxu0 %v395
    %480 = vmatpush.bf16.msra.mxu0 %v393
    %481 = vmatpush.bf16.msra.mxu0 %v391
    %482 = vmatpush.bf16.msra.mxu0 %v389
    %483 = vmatmul.bf16.gmra.mxu0 %v237
    %v484 = vpop.f32.mrf.mxu0
    %v485 = vadd.f32 %v472, %v484
    %v486 = vpop.f32.mrf.mxu0
    %487 = vdwg.mxu0
    %v488 = vmax.f32 %v459, 0.0
    %v489 = vmax.f32 %v485, 0.0
    %v490 = vpack.c.bf16 %v488, %v488
    %v491 = vpack.c.bf16 %v489, %v489
    %v492 = vld [vmem:[#allocation5] sm:$0xff]
    %v493 = vld [vmem:[#allocation5 + $0x8] sm:$0xff]
    %v494 = vld [vmem:[#allocation5 + $0x10] sm:$0xff]
    %v495 = vld [vmem:[#allocation5 + $0x18] sm:$0xff]
    %v496 = vld [vmem:[#allocation5 + $0x20] sm:$0xff]
    %v497 = vld [vmem:[#allocation5 + $0x28] sm:$0xff]
    %v498 = vld [vmem:[#allocation5 + $0x30] sm:$0xff]
    %v499 = vld [vmem:[#allocation5 + $0x38] sm:$0xff]
    %v500 = vld [vmem:[#allocation5 + $0x40] sm:$0xff]
    %v501 = vld [vmem:[#allocation5 + $0x48] sm:$0xff]
    %v502 = vld [vmem:[#allocation5 + $0x50] sm:$0xff]
    %v503 = vld [vmem:[#allocation5 + $0x58] sm:$0xff]
    %v504 = vld [vmem:[#allocation5 + $0x60] sm:$0xff]
    %v505 = vld [vmem:[#allocation5 + $0x68] sm:$0xff]
    %v506 = vld [vmem:[#allocation5 + $0x70] sm:$0xff]
    %v507 = vld [vmem:[#allocation5 + $0x78] sm:$0xff]
    %v508 = vld [vmem:[#allocation5 + $0x80] sm:$0xff]
    %v509 = vld [vmem:[#allocation5 + $0x88] sm:$0xff]
    %v510 = vld [vmem:[#allocation5 + $0x90] sm:$0xff]
    %v511 = vld [vmem:[#allocation5 + $0x98] sm:$0xff]
    %v512 = vld [vmem:[#allocation5 + $0xa0] sm:$0xff]
    %v513 = vld [vmem:[#allocation5 + $0xa8] sm:$0xff]
    %v514 = vld [vmem:[#allocation5 + $0xb0] sm:$0xff]
    %v515 = vld [vmem:[#allocation5 + $0xb8] sm:$0xff]
    %v516 = vld [vmem:[#allocation5 + $0xc0] sm:$0xff]
    %v517 = vld [vmem:[#allocation5 + $0xc8] sm:$0xff]
    %v518 = vld [vmem:[#allocation5 + $0xd0] sm:$0xff]
    %v519 = vld [vmem:[#allocation5 + $0xd8] sm:$0xff]
    %v520 = vld [vmem:[#allocation5 + $0xe0] sm:$0xff]
    %v521 = vld [vmem:[#allocation5 + $0xe8] sm:$0xff]
    %v522 = vld [vmem:[#allocation5 + $0xf0] sm:$0xff]
    %v523 = vld [vmem:[#allocation5 + $0xf8] sm:$0xff]
    %v524 = vld [vmem:[%s6] sm:$0x3]
    %v526 = vperm.slane %v524, 0
    %v527 = vperm.slane %v524, 1
    %v562 = vunpack.c.l.b16 %v492
    %v563 = vunpack.c.h.b16 %v492
    %v564 = vunpack.c.l.b16 %v493
    %v565 = vunpack.c.h.b16 %v493
    %v566 = vunpack.c.l.b16 %v494
    %v567 = vunpack.c.h.b16 %v494
    %v568 = vunpack.c.l.b16 %v495
    %v569 = vunpack.c.h.b16 %v495
    %v570 = vunpack.c.l.b16 %v496
    %v571 = vunpack.c.h.b16 %v496
    %v572 = vunpack.c.l.b16 %v497
    %v573 = vunpack.c.h.b16 %v497
    %v574 = vunpack.c.l.b16 %v498
    %v575 = vunpack.c.h.b16 %v498
    %v576 = vunpack.c.l.b16 %v499
    %v577 = vunpack.c.h.b16 %v499
    %v578 = vunpack.c.l.b16 %v500
    %v579 = vunpack.c.h.b16 %v500
    %v580 = vunpack.c.l.b16 %v501
    %v581 = vunpack.c.h.b16 %v501
    %v582 = vunpack.c.l.b16 %v502
    %v583 = vunpack.c.h.b16 %v502
    %v584 = vunpack.c.l.b16 %v503
    %v585 = vunpack.c.h.b16 %v503
    %v586 = vunpack.c.l.b16 %v504
    %v587 = vunpack.c.h.b16 %v504
    %v588 = vunpack.c.l.b16 %v505
    %v589 = vunpack.c.h.b16 %v505
    %v590 = vunpack.c.l.b16 %v506
    %v591 = vunpack.c.h.b16 %v506
    %v592 = vunpack.c.l.b16 %v507
    %v593 = vunpack.c.h.b16 %v507
    %v594 = vunpack.c.l.b16 %v508
    %v595 = vunpack.c.h.b16 %v508
    %v596 = vunpack.c.l.b16 %v509
    %v597 = vunpack.c.h.b16 %v509
    %v598 = vunpack.c.l.b16 %v510
    %v599 = vunpack.c.h.b16 %v510
    %v600 = vunpack.c.l.b16 %v511
    %v601 = vunpack.c.h.b16 %v511
    %v602 = vunpack.c.l.b16 %v512
    %v603 = vunpack.c.h.b16 %v512
    %v604 = vunpack.c.l.b16 %v513
    %v605 = vunpack.c.h.b16 %v513
    %v606 = vunpack.c.l.b16 %v514
    %v607 = vunpack.c.h.b16 %v514
    %v608 = vunpack.c.l.b16 %v515
    %v609 = vunpack.c.h.b16 %v515
    %v610 = vunpack.c.l.b16 %v516
    %v611 = vunpack.c.h.b16 %v516
    %v612 = vunpack.c.l.b16 %v517
    %v613 = vunpack.c.h.b16 %v517
    %v614 = vunpack.c.l.b16 %v518
    %v615 = vunpack.c.h.b16 %v518
    %v616 = vunpack.c.l.b16 %v519
    %v617 = vunpack.c.h.b16 %v519
    %v618 = vunpack.c.l.b16 %v520
    %v619 = vunpack.c.h.b16 %v520
    %v620 = vunpack.c.l.b16 %v521
    %v621 = vunpack.c.h.b16 %v521
    %v622 = vunpack.c.l.b16 %v522
    %v623 = vunpack.c.h.b16 %v522
    %v624 = vunpack.c.l.b16 %v523
    %v625 = vunpack.c.h.b16 %v523
    %v626 = vpack.c.b16 %v564, %v562
    %v627 = vpack.c.b16 %v565, %v563
    %v628 = vpack.c.b16 %v568, %v566
    %v629 = vpack.c.b16 %v569, %v567
    %v630 = vpack.c.b16 %v572, %v570
    %v631 = vpack.c.b16 %v573, %v571
    %v632 = vpack.c.b16 %v576, %v574
    %v633 = vpack.c.b16 %v577, %v575
    %v634 = vpack.c.b16 %v580, %v578
    %v635 = vpack.c.b16 %v581, %v579
    %v636 = vpack.c.b16 %v584, %v582
    %v637 = vpack.c.b16 %v585, %v583
    %v638 = vpack.c.b16 %v588, %v586
    %v639 = vpack.c.b16 %v589, %v587
    %v640 = vpack.c.b16 %v592, %v590
    %v641 = vpack.c.b16 %v593, %v591
    %v642 = vpack.c.b16 %v596, %v594
    %v643 = vpack.c.b16 %v597, %v595
    %v644 = vpack.c.b16 %v600, %v598
    %v645 = vpack.c.b16 %v601, %v599
    %v646 = vpack.c.b16 %v604, %v602
    %v647 = vpack.c.b16 %v605, %v603
    %v648 = vpack.c.b16 %v608, %v606
    %v649 = vpack.c.b16 %v609, %v607
    %v650 = vpack.c.b16 %v612, %v610
    %v651 = vpack.c.b16 %v613, %v611
    %v652 = vpack.c.b16 %v616, %v614
    %v653 = vpack.c.b16 %v617, %v615
    %v654 = vpack.c.b16 %v620, %v618
    %v655 = vpack.c.b16 %v621, %v619
    %v656 = vpack.c.b16 %v624, %v622
    %v657 = vpack.c.b16 %v625, %v623
    %690 = vmatpush.bf16.msra.mxu0 %v640
    %691 = vmatpush.bf16.msra.mxu0 %v638
    %692 = vmatpush.bf16.msra.mxu0 %v636
    %693 = vmatpush.bf16.msra.mxu0 %v634
    %694 = vmatpush.bf16.msra.mxu0 %v632
    %695 = vmatpush.bf16.msra.mxu0 %v630
    %696 = vmatpush.bf16.msra.mxu0 %v628
    %697 = vmatpush.bf16.msra.mxu0 %v626
    %698 = vmatmul.bf16.gmra.mxu0 %v490
    %v699 = vpop.f32.mrf.mxu0
    %v700 = vadd.f32 %v526, %v699
    %v701 = vpop.f32.mrf.mxu0
    %702 = vdwg.mxu0
    %703 = vmatpush.bf16.msra.mxu0 %v656
    %704 = vmatpush.bf16.msra.mxu0 %v654
    %705 = vmatpush.bf16.msra.mxu0 %v652
    %706 = vmatpush.bf16.msra.mxu0 %v650
    %707 = vmatpush.bf16.msra.mxu0 %v648
    %708 = vmatpush.bf16.msra.mxu0 %v646
    %709 = vmatpush.bf16.msra.mxu0 %v644
    %710 = vmatpush.bf16.msra.mxu0 %v642
    %711 = vmatmul.bf16.gmra.mxu0 %v491
    %v712 = vpop.f32.mrf.mxu0
    %v713 = vadd.f32 %v700, %v712
    %v714 = vpop.f32.mrf.mxu0
    %715 = vdwg.mxu0
    %716 = vmatpush.bf16.msra.mxu0 %v641
    %717 = vmatpush.bf16.msra.mxu0 %v639
    %718 = vmatpush.bf16.msra.mxu0 %v637
    %719 = vmatpush.bf16.msra.mxu0 %v635
    %720 = vmatpush.bf16.msra.mxu0 %v633
    %721 = vmatpush.bf16.msra.mxu0 %v631
    %722 = vmatpush.bf16.msra.mxu0 %v629
    %723 = vmatpush.bf16.msra.mxu0 %v627
    %724 = vmatmul.bf16.gmra.mxu0 %v490
    %v725 = vpop.f32.mrf.mxu0
    %v726 = vadd.f32 %v527, %v725
    %v727 = vpop.f32.mrf.mxu0
    %728 = vdwg.mxu0
    %729 = vmatpush.bf16.msra.mxu0 %v657
    %730 = vmatpush.bf16.msra.mxu0 %v655
    %731 = vmatpush.bf16.msra.mxu0 %v653
    %732 = vmatpush.bf16.msra.mxu0 %v651
    %733 = vmatpush.bf16.msra.mxu0 %v649
    %734 = vmatpush.bf16.msra.mxu0 %v647
    %735 = vmatpush.bf16.msra.mxu0 %v645
    %736 = vmatpush.bf16.msra.mxu0 %v643
    %737 = vmatmul.bf16.gmra.mxu0 %v491
    %v738 = vpop.f32.mrf.mxu0
    %v739 = vadd.f32 %v726, %v738
    %v740 = vpop.f32.mrf.mxu0
    %741 = vdwg.mxu0
    %v742 = vmax.f32 %v713, 0.0
    %v743 = vmax.f32 %v739, 0.0
    %v744 = vpack.c.bf16 %v742, %v742
    %v745 = vpack.c.bf16 %v743, %v743
    %v746 = vld [vmem:[#allocation7] sm:$0xff]
    %v747 = vld [vmem:[#allocation7 + $0x8] sm:$0xff]
    %v748 = vld [vmem:[#allocation7 + $0x10] sm:$0xff]
    %v749 = vld [vmem:[#allocation7 + $0x18] sm:$0xff]
    %v750 = vld [vmem:[#allocation7 + $0x20] sm:$0xff]
    %v751 = vld [vmem:[#allocation7 + $0x28] sm:$0xff]
    %v752 = vld [vmem:[#allocation7 + $0x30] sm:$0xff]
    %v753 = vld [vmem:[#allocation7 + $0x38] sm:$0xff]
    %v754 = vld [vmem:[#allocation7 + $0x40] sm:$0xff]
    %v755 = vld [vmem:[#allocation7 + $0x48] sm:$0xff]
    %v756 = vld [vmem:[#allocation7 + $0x50] sm:$0xff]
    %v757 = vld [vmem:[#allocation7 + $0x58] sm:$0xff]
    %v758 = vld [vmem:[#allocation7 + $0x60] sm:$0xff]
    %v759 = vld [vmem:[#allocation7 + $0x68] sm:$0xff]
    %v760 = vld [vmem:[#allocation7 + $0x70] sm:$0xff]
    %v761 = vld [vmem:[#allocation7 + $0x78] sm:$0xff]
    %v762 = vld [vmem:[#allocation7 + $0x80] sm:$0xff]
    %v763 = vld [vmem:[#allocation7 + $0x88] sm:$0xff]
    %v764 = vld [vmem:[#allocation7 + $0x90] sm:$0xff]
    %v765 = vld [vmem:[#allocation7 + $0x98] sm:$0xff]
    %v766 = vld [vmem:[#allocation7 + $0xa0] sm:$0xff]
    %v767 = vld [vmem:[#allocation7 + $0xa8] sm:$0xff]
    %v768 = vld [vmem:[#allocation7 + $0xb0] sm:$0xff]
    %v769 = vld [vmem:[#allocation7 + $0xb8] sm:$0xff]
    %v770 = vld [vmem:[#allocation7 + $0xc0] sm:$0xff]
    %v771 = vld [vmem:[#allocation7 + $0xc8] sm:$0xff]
    %v772 = vld [vmem:[#allocation7 + $0xd0] sm:$0xff]
    %v773 = vld [vmem:[#allocation7 + $0xd8] sm:$0xff]
    %v774 = vld [vmem:[#allocation7 + $0xe0] sm:$0xff]
    %v775 = vld [vmem:[#allocation7 + $0xe8] sm:$0xff]
    %v776 = vld [vmem:[#allocation7 + $0xf0] sm:$0xff]
    %v777 = vld [vmem:[#allocation7 + $0xf8] sm:$0xff]
    %v778 = vld [vmem:[%s8] sm:$0x3]
    %v780 = vperm.slane %v778, 0
    %v781 = vperm.slane %v778, 1
    %v816 = vunpack.c.l.b16 %v746
    %v817 = vunpack.c.h.b16 %v746
    %v818 = vunpack.c.l.b16 %v747
    %v819 = vunpack.c.h.b16 %v747
    %v820 = vunpack.c.l.b16 %v748
    %v821 = vunpack.c.h.b16 %v748
    %v822 = vunpack.c.l.b16 %v749
    %v823 = vunpack.c.h.b16 %v749
    %v824 = vunpack.c.l.b16 %v750
    %v825 = vunpack.c.h.b16 %v750
    %v826 = vunpack.c.l.b16 %v751
    %v827 = vunpack.c.h.b16 %v751
    %v828 = vunpack.c.l.b16 %v752
    %v829 = vunpack.c.h.b16 %v752
    %v830 = vunpack.c.l.b16 %v753
    %v831 = vunpack.c.h.b16 %v753
    %v832 = vunpack.c.l.b16 %v754
    %v833 = vunpack.c.h.b16 %v754
    %v834 = vunpack.c.l.b16 %v755
    %v835 = vunpack.c.h.b16 %v755
    %v836 = vunpack.c.l.b16 %v756
    %v837 = vunpack.c.h.b16 %v756
    %v838 = vunpack.c.l.b16 %v757
    %v839 = vunpack.c.h.b16 %v757
    %v840 = vunpack.c.l.b16 %v758
    %v841 = vunpack.c.h.b16 %v758
    %v842 = vunpack.c.l.b16 %v759
    %v843 = vunpack.c.h.b16 %v759
    %v844 = vunpack.c.l.b16 %v760
    %v845 = vunpack.c.h.b16 %v760
    %v846 = vunpack.c.l.b16 %v761
    %v847 = vunpack.c.h.b16 %v761
    %v848 = vunpack.c.l.b16 %v762
    %v849 = vunpack.c.h.b16 %v762
    %v850 = vunpack.c.l.b16 %v763
    %v851 = vunpack.c.h.b16 %v763
    %v852 = vunpack.c.l.b16 %v764
    %v853 = vunpack.c.h.b16 %v764
    %v854 = vunpack.c.l.b16 %v765
    %v855 = vunpack.c.h.b16 %v765
    %v856 = vunpack.c.l.b16 %v766
    %v857 = vunpack.c.h.b16 %v766
    %v858 = vunpack.c.l.b16 %v767
    %v859 = vunpack.c.h.b16 %v767
    %v860 = vunpack.c.l.b16 %v768
    %v861 = vunpack.c.h.b16 %v768
    %v862 = vunpack.c.l.b16 %v769
    %v863 = vunpack.c.h.b16 %v769
    %v864 = vunpack.c.l.b16 %v770
    %v865 = vunpack.c.h.b16 %v770
    %v866 = vunpack.c.l.b16 %v771
    %v867 = vunpack.c.h.b16 %v771
    %v868 = vunpack.c.l.b16 %v772
    %v869 = vunpack.c.h.b16 %v772
    %v870 = vunpack.c.l.b16 %v773
    %v871 = vunpack.c.h.b16 %v773
    %v872 = vunpack.c.l.b16 %v774
    %v873 = vunpack.c.h.b16 %v774
    %v874 = vunpack.c.l.b16 %v775
    %v875 = vunpack.c.h.b16 %v775
    %v876 = vunpack.c.l.b16 %v776
    %v877 = vunpack.c.h.b16 %v776
    %v878 = vunpack.c.l.b16 %v777
    %v879 = vunpack.c.h.b16 %v777
    %v880 = vpack.c.b16 %v818, %v816
    %v881 = vpack.c.b16 %v819, %v817
    %v882 = vpack.c.b16 %v822, %v820
    %v883 = vpack.c.b16 %v823, %v821
    %v884 = vpack.c.b16 %v826, %v824
    %v885 = vpack.c.b16 %v827, %v825
    %v886 = vpack.c.b16 %v830, %v828
    %v887 = vpack.c.b16 %v831, %v829
    %v888 = vpack.c.b16 %v834, %v832
    %v889 = vpack.c.b16 %v835, %v833
    %v890 = vpack.c.b16 %v838, %v836
    %v891 = vpack.c.b16 %v839, %v837
    %v892 = vpack.c.b16 %v842, %v840
    %v893 = vpack.c.b16 %v843, %v841
    %v894 = vpack.c.b16 %v846, %v844
    %v895 = vpack.c.b16 %v847, %v845
    %v896 = vpack.c.b16 %v850, %v848
    %v897 = vpack.c.b16 %v851, %v849
    %v898 = vpack.c.b16 %v854, %v852
    %v899 = vpack.c.b16 %v855, %v853
    %v900 = vpack.c.b16 %v858, %v856
    %v901 = vpack.c.b16 %v859, %v857
    %v902 = vpack.c.b16 %v862, %v860
    %v903 = vpack.c.b16 %v863, %v861
    %v904 = vpack.c.b16 %v866, %v864
    %v905 = vpack.c.b16 %v867, %v865
    %v906 = vpack.c.b16 %v870, %v868
    %v907 = vpack.c.b16 %v871, %v869
    %v908 = vpack.c.b16 %v874, %v872
    %v909 = vpack.c.b16 %v875, %v873
    %v910 = vpack.c.b16 %v878, %v876
    %v911 = vpack.c.b16 %v879, %v877
    %944 = vmatpush.bf16.msra.mxu0 %v894
    %945 = vmatpush.bf16.msra.mxu0 %v892
    %946 = vmatpush.bf16.msra.mxu0 %v890
    %947 = vmatpush.bf16.msra.mxu0 %v888
    %948 = vmatpush.bf16.msra.mxu0 %v886
    %949 = vmatpush.bf16.msra.mxu0 %v884
    %950 = vmatpush.bf16.msra.mxu0 %v882
    %951 = vmatpush.bf16.msra.mxu0 %v880
    %952 = vmatmul.bf16.gmra.mxu0 %v744
    %v953 = vpop.f32.mrf.mxu0
    %v954 = vadd.f32 %v780, %v953
    %v955 = vpop.f32.mrf.mxu0
    %956 = vdwg.mxu0
    %957 = vmatpush.bf16.msra.mxu0 %v910
    %958 = vmatpush.bf16.msra.mxu0 %v908
    %959 = vmatpush.bf16.msra.mxu0 %v906
    %960 = vmatpush.bf16.msra.mxu0 %v904
    %961 = vmatpush.bf16.msra.mxu0 %v902
    %962 = vmatpush.bf16.msra.mxu0 %v900
    %963 = vmatpush.bf16.msra.mxu0 %v898
    %964 = vmatpush.bf16.msra.mxu0 %v896
    %965 = vmatmul.bf16.gmra.mxu0 %v745
    %v966 = vpop.f32.mrf.mxu0
    %v967 = vadd.f32 %v954, %v966
    %v968 = vpop.f32.mrf.mxu0
    %969 = vdwg.mxu0
    %970 = vmatpush.bf16.msra.mxu0 %v895
    %971 = vmatpush.bf16.msra.mxu0 %v893
    %972 = vmatpush.bf16.msra.mxu0 %v891
    %973 = vmatpush.bf16.msra.mxu0 %v889
    %974 = vmatpush.bf16.msra.mxu0 %v887
    %975 = vmatpush.bf16.msra.mxu0 %v885
    %976 = vmatpush.bf16.msra.mxu0 %v883
    %977 = vmatpush.bf16.msra.mxu0 %v881
    %978 = vmatmul.bf16.gmra.mxu0 %v744
    %v979 = vpop.f32.mrf.mxu0
    %v980 = vadd.f32 %v781, %v979
    %v981 = vpop.f32.mrf.mxu0
    %982 = vdwg.mxu0
    %983 = vmatpush.bf16.msra.mxu0 %v911
    %984 = vmatpush.bf16.msra.mxu0 %v909
    %985 = vmatpush.bf16.msra.mxu0 %v907
    %986 = vmatpush.bf16.msra.mxu0 %v905
    %987 = vmatpush.bf16.msra.mxu0 %v903
    %988 = vmatpush.bf16.msra.mxu0 %v901
    %989 = vmatpush.bf16.msra.mxu0 %v899
    %990 = vmatpush.bf16.msra.mxu0 %v897
    %991 = vmatmul.bf16.gmra.mxu0 %v745
    %v992 = vpop.f32.mrf.mxu0
    %v993 = vadd.f32 %v980, %v992
    %v994 = vpop.f32.mrf.mxu0
    %995 = vdwg.mxu0
    %v996 = vmax.f32 %v967, 0.0
    %v997 = vmax.f32 %v993, 0.0
    %v998 = vpack.c.bf16 %v996, %v996
    %v999 = vpack.c.bf16 %v997, %v997
    %v1000 = vld [vmem:[#allocation8] sm:$0xff]
    %v1001 = vld [vmem:[#allocation8 + $0x8] sm:$0xff]
    %v1002 = vld [vmem:[#allocation8 + $0x10] sm:$0xff]
    %v1003 = vld [vmem:[#allocation8 + $0x18] sm:$0xff]
    %v1004 = vld [vmem:[#allocation8 + $0x20] sm:$0xff]
    %v1005 = vld [vmem:[#allocation8 + $0x28] sm:$0xff]
    %v1006 = vld [vmem:[#allocation8 + $0x30] sm:$0xff]
    %v1007 = vld [vmem:[#allocation8 + $0x38] sm:$0xff]
    %v1008 = vld [vmem:[#allocation8 + $0x40] sm:$0xff]
    %v1009 = vld [vmem:[#allocation8 + $0x48] sm:$0xff]
    %v1010 = vld [vmem:[#allocation8 + $0x50] sm:$0xff]
    %v1011 = vld [vmem:[#allocation8 + $0x58] sm:$0xff]
    %v1012 = vld [vmem:[#allocation8 + $0x60] sm:$0xff]
    %v1013 = vld [vmem:[#allocation8 + $0x68] sm:$0xff]
    %v1014 = vld [vmem:[#allocation8 + $0x70] sm:$0xff]
    %v1015 = vld [vmem:[#allocation8 + $0x78] sm:$0xff]
    %v1016 = vld [vmem:[#allocation8 + $0x80] sm:$0xff]
    %v1017 = vld [vmem:[#allocation8 + $0x88] sm:$0xff]
    %v1018 = vld [vmem:[#allocation8 + $0x90] sm:$0xff]
    %v1019 = vld [vmem:[#allocation8 + $0x98] sm:$0xff]
    %v1020 = vld [vmem:[#allocation8 + $0xa0] sm:$0xff]
    %v1021 = vld [vmem:[#allocation8 + $0xa8] sm:$0xff]
    %v1022 = vld [vmem:[#allocation8 + $0xb0] sm:$0xff]
    %v1023 = vld [vmem:[#allocation8 + $0xb8] sm:$0xff]
    %v1024 = vld [vmem:[#allocation8 + $0xc0] sm:$0xff]
    %v1025 = vld [vmem:[#allocation8 + $0xc8] sm:$0xff]
    %v1026 = vld [vmem:[#allocation8 + $0xd0] sm:$0xff]
    %v1027 = vld [vmem:[#allocation8 + $0xd8] sm:$0xff]
    %v1028 = vld [vmem:[#allocation8 + $0xe0] sm:$0xff]
    %v1029 = vld [vmem:[#allocation8 + $0xe8] sm:$0xff]
    %v1030 = vld [vmem:[#allocation8 + $0xf0] sm:$0xff]
    %v1031 = vld [vmem:[#allocation8 + $0xf8] sm:$0xff]
    %v1032 = vld [vmem:[%s10] sm:$0x3]
    %v1034 = vperm.slane %v1032, 0
    %v1035 = vperm.slane %v1032, 1
    %v1070 = vunpack.c.l.b16 %v1000
    %v1071 = vunpack.c.h.b16 %v1000
    %v1072 = vunpack.c.l.b16 %v1001
    %v1073 = vunpack.c.h.b16 %v1001
    %v1074 = vunpack.c.l.b16 %v1002
    %v1075 = vunpack.c.h.b16 %v1002
    %v1076 = vunpack.c.l.b16 %v1003
    %v1077 = vunpack.c.h.b16 %v1003
    %v1078 = vunpack.c.l.b16 %v1004
    %v1079 = vunpack.c.h.b16 %v1004
    %v1080 = vunpack.c.l.b16 %v1005
    %v1081 = vunpack.c.h.b16 %v1005
    %v1082 = vunpack.c.l.b16 %v1006
    %v1083 = vunpack.c.h.b16 %v1006
    %v1084 = vunpack.c.l.b16 %v1007
    %v1085 = vunpack.c.h.b16 %v1007
    %v1086 = vunpack.c.l.b16 %v1008
    %v1087 = vunpack.c.h.b16 %v1008
    %v1088 = vunpack.c.l.b16 %v1009
    %v1089 = vunpack.c.h.b16 %v1009
    %v1090 = vunpack.c.l.b16 %v1010
    %v1091 = vunpack.c.h.b16 %v1010
    %v1092 = vunpack.c.l.b16 %v1011
    %v1093 = vunpack.c.h.b16 %v1011
    %v1094 = vunpack.c.l.b16 %v1012
    %v1095 = vunpack.c.h.b16 %v1012
    %v1096 = vunpack.c.l.b16 %v1013
    %v1097 = vunpack.c.h.b16 %v1013
    %v1098 = vunpack.c.l.b16 %v1014
    %v1099 = vunpack.c.h.b16 %v1014
    %v1100 = vunpack.c.l.b16 %v1015
    %v1101 = vunpack.c.h.b16 %v1015
    %v1102 = vunpack.c.l.b16 %v1016
    %v1103 = vunpack.c.h.b16 %v1016
    %v1104 = vunpack.c.l.b16 %v1017
    %v1105 = vunpack.c.h.b16 %v1017
    %v1106 = vunpack.c.l.b16 %v1018
    %v1107 = vunpack.c.h.b16 %v1018
    %v1108 = vunpack.c.l.b16 %v1019
    %v1109 = vunpack.c.h.b16 %v1019
    %v1110 = vunpack.c.l.b16 %v1020
    %v1111 = vunpack.c.h.b16 %v1020
    %v1112 = vunpack.c.l.b16 %v1021
    %v1113 = vunpack.c.h.b16 %v1021
    %v1114 = vunpack.c.l.b16 %v1022
    %v1115 = vunpack.c.h.b16 %v1022
    %v1116 = vunpack.c.l.b16 %v1023
    %v1117 = vunpack.c.h.b16 %v1023
    %v1118 = vunpack.c.l.b16 %v1024
    %v1119 = vunpack.c.h.b16 %v1024
    %v1120 = vunpack.c.l.b16 %v1025
    %v1121 = vunpack.c.h.b16 %v1025
    %v1122 = vunpack.c.l.b16 %v1026
    %v1123 = vunpack.c.h.b16 %v1026
    %v1124 = vunpack.c.l.b16 %v1027
    %v1125 = vunpack.c.h.b16 %v1027
    %v1126 = vunpack.c.l.b16 %v1028
    %v1127 = vunpack.c.h.b16 %v1028
    %v1128 = vunpack.c.l.b16 %v1029
    %v1129 = vunpack.c.h.b16 %v1029
    %v1130 = vunpack.c.l.b16 %v1030
    %v1131 = vunpack.c.h.b16 %v1030
    %v1132 = vunpack.c.l.b16 %v1031
    %v1133 = vunpack.c.h.b16 %v1031
    %v1134 = vpack.c.b16 %v1072, %v1070
    %v1135 = vpack.c.b16 %v1073, %v1071
    %v1136 = vpack.c.b16 %v1076, %v1074
    %v1137 = vpack.c.b16 %v1077, %v1075
    %v1138 = vpack.c.b16 %v1080, %v1078
    %v1139 = vpack.c.b16 %v1081, %v1079
    %v1140 = vpack.c.b16 %v1084, %v1082
    %v1141 = vpack.c.b16 %v1085, %v1083
    %v1142 = vpack.c.b16 %v1088, %v1086
    %v1143 = vpack.c.b16 %v1089, %v1087
    %v1144 = vpack.c.b16 %v1092, %v1090
    %v1145 = vpack.c.b16 %v1093, %v1091
    %v1146 = vpack.c.b16 %v1096, %v1094
    %v1147 = vpack.c.b16 %v1097, %v1095
    %v1148 = vpack.c.b16 %v1100, %v1098
    %v1149 = vpack.c.b16 %v1101, %v1099
    %v1150 = vpack.c.b16 %v1104, %v1102
    %v1151 = vpack.c.b16 %v1105, %v1103
    %v1152 = vpack.c.b16 %v1108, %v1106
    %v1153 = vpack.c.b16 %v1109, %v1107
    %v1154 = vpack.c.b16 %v1112, %v1110
    %v1155 = vpack.c.b16 %v1113, %v1111
    %v1156 = vpack.c.b16 %v1116, %v1114
    %v1157 = vpack.c.b16 %v1117, %v1115
    %v1158 = vpack.c.b16 %v1120, %v1118
    %v1159 = vpack.c.b16 %v1121, %v1119
    %v1160 = vpack.c.b16 %v1124, %v1122
    %v1161 = vpack.c.b16 %v1125, %v1123
    %v1162 = vpack.c.b16 %v1128, %v1126
    %v1163 = vpack.c.b16 %v1129, %v1127
    %v1164 = vpack.c.b16 %v1132, %v1130
    %v1165 = vpack.c.b16 %v1133, %v1131
    %1198 = vmatpush.bf16.msra.mxu0 %v1148
    %1199 = vmatpush.bf16.msra.mxu0 %v1146
    %1200 = vmatpush.bf16.msra.mxu0 %v1144
    %1201 = vmatpush.bf16.msra.mxu0 %v1142
    %1202 = vmatpush.bf16.msra.mxu0 %v1140
    %1203 = vmatpush.bf16.msra.mxu0 %v1138
    %1204 = vmatpush.bf16.msra.mxu0 %v1136
    %1205 = vmatpush.bf16.msra.mxu0 %v1134
    %1206 = vmatmul.bf16.gmra.mxu0 %v998
    %v1207 = vpop.f32.mrf.mxu0
    %v1208 = vadd.f32 %v1034, %v1207
    %v1209 = vpop.f32.mrf.mxu0
    %1210 = vdwg.mxu0
    %1211 = vmatpush.bf16.msra.mxu0 %v1164
    %1212 = vmatpush.bf16.msra.mxu0 %v1162
    %1213 = vmatpush.bf16.msra.mxu0 %v1160
    %1214 = vmatpush.bf16.msra.mxu0 %v1158
    %1215 = vmatpush.bf16.msra.mxu0 %v1156
    %1216 = vmatpush.bf16.msra.mxu0 %v1154
    %1217 = vmatpush.bf16.msra.mxu0 %v1152
    %1218 = vmatpush.bf16.msra.mxu0 %v1150
    %1219 = vmatmul.bf16.gmra.mxu0 %v999
    %v1220 = vpop.f32.mrf.mxu0
    %v1221 = vadd.f32 %v1208, %v1220
    %v1222 = vpop.f32.mrf.mxu0
    %1223 = vdwg.mxu0
    %1224 = vmatpush.bf16.msra.mxu0 %v1149
    %1225 = vmatpush.bf16.msra.mxu0 %v1147
    %1226 = vmatpush.bf16.msra.mxu0 %v1145
    %1227 = vmatpush.bf16.msra.mxu0 %v1143
    %1228 = vmatpush.bf16.msra.mxu0 %v1141
    %1229 = vmatpush.bf16.msra.mxu0 %v1139
    %1230 = vmatpush.bf16.msra.mxu0 %v1137
    %1231 = vmatpush.bf16.msra.mxu0 %v1135
    %1232 = vmatmul.bf16.gmra.mxu0 %v998
    %v1233 = vpop.f32.mrf.mxu0
    %v1234 = vadd.f32 %v1035, %v1233
    %v1235 = vpop.f32.mrf.mxu0
    %1236 = vdwg.mxu0
    %1237 = vmatpush.bf16.msra.mxu0 %v1165
    %1238 = vmatpush.bf16.msra.mxu0 %v1163
    %1239 = vmatpush.bf16.msra.mxu0 %v1161
    %1240 = vmatpush.bf16.msra.mxu0 %v1159
    %1241 = vmatpush.bf16.msra.mxu0 %v1157
    %1242 = vmatpush.bf16.msra.mxu0 %v1155
    %1243 = vmatpush.bf16.msra.mxu0 %v1153
    %1244 = vmatpush.bf16.msra.mxu0 %v1151
    %1245 = vmatmul.bf16.gmra.mxu0 %v999
    %v1246 = vpop.f32.mrf.mxu0
    %v1247 = vadd.f32 %v1234, %v1246
    %v1248 = vpop.f32.mrf.mxu0
    %1249 = vdwg.mxu0
    %v1250 = vmax.f32 %v1221, 0.0
    %v1251 = vmax.f32 %v1247, 0.0
    %v1252 = vpack.c.bf16 %v1250, %v1250
    %v1253 = vpack.c.bf16 %v1251, %v1251
    %v1254 = vld [vmem:[#allocation10] sm:$0xff]
    %v1255 = vld [vmem:[#allocation10 + $0x8] sm:$0xff]
    %v1256 = vld [vmem:[#allocation10 + $0x10] sm:$0xff]
    %v1257 = vld [vmem:[#allocation10 + $0x18] sm:$0xff]
    %v1258 = vld [vmem:[#allocation10 + $0x20] sm:$0xff]
    %v1259 = vld [vmem:[#allocation10 + $0x28] sm:$0xff]
    %v1260 = vld [vmem:[#allocation10 + $0x30] sm:$0xff]
    %v1261 = vld [vmem:[#allocation10 + $0x38] sm:$0xff]
    %v1262 = vld [vmem:[#allocation10 + $0x40] sm:$0xff]
    %v1263 = vld [vmem:[#allocation10 + $0x48] sm:$0xff]
    %v1264 = vld [vmem:[#allocation10 + $0x50] sm:$0xff]
    %v1265 = vld [vmem:[#allocation10 + $0x58] sm:$0xff]
    %v1266 = vld [vmem:[#allocation10 + $0x60] sm:$0xff]
    %v1267 = vld [vmem:[#allocation10 + $0x68] sm:$0xff]
    %v1268 = vld [vmem:[#allocation10 + $0x70] sm:$0xff]
    %v1269 = vld [vmem:[#allocation10 + $0x78] sm:$0xff]
    %v1270 = vld [vmem:[#allocation10 + $0x80] sm:$0xff]
    %v1271 = vld [vmem:[#allocation10 + $0x88] sm:$0xff]
    %v1272 = vld [vmem:[#allocation10 + $0x90] sm:$0xff]
    %v1273 = vld [vmem:[#allocation10 + $0x98] sm:$0xff]
    %v1274 = vld [vmem:[#allocation10 + $0xa0] sm:$0xff]
    %v1275 = vld [vmem:[#allocation10 + $0xa8] sm:$0xff]
    %v1276 = vld [vmem:[#allocation10 + $0xb0] sm:$0xff]
    %v1277 = vld [vmem:[#allocation10 + $0xb8] sm:$0xff]
    %v1278 = vld [vmem:[#allocation10 + $0xc0] sm:$0xff]
    %v1279 = vld [vmem:[#allocation10 + $0xc8] sm:$0xff]
    %v1280 = vld [vmem:[#allocation10 + $0xd0] sm:$0xff]
    %v1281 = vld [vmem:[#allocation10 + $0xd8] sm:$0xff]
    %v1282 = vld [vmem:[#allocation10 + $0xe0] sm:$0xff]
    %v1283 = vld [vmem:[#allocation10 + $0xe8] sm:$0xff]
    %v1284 = vld [vmem:[#allocation10 + $0xf0] sm:$0xff]
    %v1285 = vld [vmem:[#allocation10 + $0xf8] sm:$0xff]
    %v1286 = vld [vmem:[%s12] sm:$0x3]
    %v1288 = vperm.slane %v1286, 0
    %v1289 = vperm.slane %v1286, 1
    %v1324 = vunpack.c.l.b16 %v1254
    %v1325 = vunpack.c.h.b16 %v1254
    %v1326 = vunpack.c.l.b16 %v1255
    %v1327 = vunpack.c.h.b16 %v1255
    %v1328 = vunpack.c.l.b16 %v1256
    %v1329 = vunpack.c.h.b16 %v1256
    %v1330 = vunpack.c.l.b16 %v1257
    %v1331 = vunpack.c.h.b16 %v1257
    %v1332 = vunpack.c.l.b16 %v1258
    %v1333 = vunpack.c.h.b16 %v1258
    %v1334 = vunpack.c.l.b16 %v1259
    %v1335 = vunpack.c.h.b16 %v1259
    %v1336 = vunpack.c.l.b16 %v1260
    %v1337 = vunpack.c.h.b16 %v1260
    %v1338 = vunpack.c.l.b16 %v1261
    %v1339 = vunpack.c.h.b16 %v1261
    %v1340 = vunpack.c.l.b16 %v1262
    %v1341 = vunpack.c.h.b16 %v1262
    %v1342 = vunpack.c.l.b16 %v1263
    %v1343 = vunpack.c.h.b16 %v1263
    %v1344 = vunpack.c.l.b16 %v1264
    %v1345 = vunpack.c.h.b16 %v1264
    %v1346 = vunpack.c.l.b16 %v1265
    %v1347 = vunpack.c.h.b16 %v1265
    %v1348 = vunpack.c.l.b16 %v1266
    %v1349 = vunpack.c.h.b16 %v1266
    %v1350 = vunpack.c.l.b16 %v1267
    %v1351 = vunpack.c.h.b16 %v1267
    %v1352 = vunpack.c.l.b16 %v1268
    %v1353 = vunpack.c.h.b16 %v1268
    %v1354 = vunpack.c.l.b16 %v1269
    %v1355 = vunpack.c.h.b16 %v1269
    %v1356 = vunpack.c.l.b16 %v1270
    %v1357 = vunpack.c.h.b16 %v1270
    %v1358 = vunpack.c.l.b16 %v1271
    %v1359 = vunpack.c.h.b16 %v1271
    %v1360 = vunpack.c.l.b16 %v1272
    %v1361 = vunpack.c.h.b16 %v1272
    %v1362 = vunpack.c.l.b16 %v1273
    %v1363 = vunpack.c.h.b16 %v1273
    %v1364 = vunpack.c.l.b16 %v1274
    %v1365 = vunpack.c.h.b16 %v1274
    %v1366 = vunpack.c.l.b16 %v1275
    %v1367 = vunpack.c.h.b16 %v1275
    %v1368 = vunpack.c.l.b16 %v1276
    %v1369 = vunpack.c.h.b16 %v1276
    %v1370 = vunpack.c.l.b16 %v1277
    %v1371 = vunpack.c.h.b16 %v1277
    %v1372 = vunpack.c.l.b16 %v1278
    %v1373 = vunpack.c.h.b16 %v1278
    %v1374 = vunpack.c.l.b16 %v1279
    %v1375 = vunpack.c.h.b16 %v1279
    %v1376 = vunpack.c.l.b16 %v1280
    %v1377 = vunpack.c.h.b16 %v1280
    %v1378 = vunpack.c.l.b16 %v1281
    %v1379 = vunpack.c.h.b16 %v1281
    %v1380 = vunpack.c.l.b16 %v1282
    %v1381 = vunpack.c.h.b16 %v1282
    %v1382 = vunpack.c.l.b16 %v1283
    %v1383 = vunpack.c.h.b16 %v1283
    %v1384 = vunpack.c.l.b16 %v1284
    %v1385 = vunpack.c.h.b16 %v1284
    %v1386 = vunpack.c.l.b16 %v1285
    %v1387 = vunpack.c.h.b16 %v1285
    %v1388 = vpack.c.b16 %v1326, %v1324
    %v1389 = vpack.c.b16 %v1327, %v1325
    %v1390 = vpack.c.b16 %v1330, %v1328
    %v1391 = vpack.c.b16 %v1331, %v1329
    %v1392 = vpack.c.b16 %v1334, %v1332
    %v1393 = vpack.c.b16 %v1335, %v1333
    %v1394 = vpack.c.b16 %v1338, %v1336
    %v1395 = vpack.c.b16 %v1339, %v1337
    %v1396 = vpack.c.b16 %v1342, %v1340
    %v1397 = vpack.c.b16 %v1343, %v1341
    %v1398 = vpack.c.b16 %v1346, %v1344
    %v1399 = vpack.c.b16 %v1347, %v1345
    %v1400 = vpack.c.b16 %v1350, %v1348
    %v1401 = vpack.c.b16 %v1351, %v1349
    %v1402 = vpack.c.b16 %v1354, %v1352
    %v1403 = vpack.c.b16 %v1355, %v1353
    %v1404 = vpack.c.b16 %v1358, %v1356
    %v1405 = vpack.c.b16 %v1359, %v1357
    %v1406 = vpack.c.b16 %v1362, %v1360
    %v1407 = vpack.c.b16 %v1363, %v1361
    %v1408 = vpack.c.b16 %v1366, %v1364
    %v1409 = vpack.c.b16 %v1367, %v1365
    %v1410 = vpack.c.b16 %v1370, %v1368
    %v1411 = vpack.c.b16 %v1371, %v1369
    %v1412 = vpack.c.b16 %v1374, %v1372
    %v1413 = vpack.c.b16 %v1375, %v1373
    %v1414 = vpack.c.b16 %v1378, %v1376
    %v1415 = vpack.c.b16 %v1379, %v1377
    %v1416 = vpack.c.b16 %v1382, %v1380
    %v1417 = vpack.c.b16 %v1383, %v1381
    %v1418 = vpack.c.b16 %v1386, %v1384
    %v1419 = vpack.c.b16 %v1387, %v1385
    %1452 = vmatpush.bf16.msra.mxu0 %v1402
    %1453 = vmatpush.bf16.msra.mxu0 %v1400
    %1454 = vmatpush.bf16.msra.mxu0 %v1398
    %1455 = vmatpush.bf16.msra.mxu0 %v1396
    %1456 = vmatpush.bf16.msra.mxu0 %v1394
    %1457 = vmatpush.bf16.msra.mxu0 %v1392
    %1458 = vmatpush.bf16.msra.mxu0 %v1390
    %1459 = vmatpush.bf16.msra.mxu0 %v1388
    %1460 = vmatmul.bf16.gmra.mxu0 %v1252
    %v1461 = vpop.f32.mrf.mxu0
    %v1462 = vadd.f32 %v1288, %v1461
    %v1463 = vpop.f32.mrf.mxu0
    %1464 = vdwg.mxu0
    %1465 = vmatpush.bf16.msra.mxu0 %v1418
    %1466 = vmatpush.bf16.msra.mxu0 %v1416
    %1467 = vmatpush.bf16.msra.mxu0 %v1414
    %1468 = vmatpush.bf16.msra.mxu0 %v1412
    %1469 = vmatpush.bf16.msra.mxu0 %v1410
    %1470 = vmatpush.bf16.msra.mxu0 %v1408
    %1471 = vmatpush.bf16.msra.mxu0 %v1406
    %1472 = vmatpush.bf16.msra.mxu0 %v1404
    %1473 = vmatmul.bf16.gmra.mxu0 %v1253
    %v1474 = vpop.f32.mrf.mxu0
    %v1475 = vadd.f32 %v1462, %v1474
    %v1476 = vpop.f32.mrf.mxu0
    %1477 = vdwg.mxu0
    %1478 = vmatpush.bf16.msra.mxu0 %v1403
    %1479 = vmatpush.bf16.msra.mxu0 %v1401
    %1480 = vmatpush.bf16.msra.mxu0 %v1399
    %1481 = vmatpush.bf16.msra.mxu0 %v1397
    %1482 = vmatpush.bf16.msra.mxu0 %v1395
    %1483 = vmatpush.bf16.msra.mxu0 %v1393
    %1484 = vmatpush.bf16.msra.mxu0 %v1391
    %1485 = vmatpush.bf16.msra.mxu0 %v1389
    %1486 = vmatmul.bf16.gmra.mxu0 %v1252
    %v1487 = vpop.f32.mrf.mxu0
    %v1488 = vadd.f32 %v1289, %v1487
    %v1489 = vpop.f32.mrf.mxu0
    %1490 = vdwg.mxu0
    %1491 = vmatpush.bf16.msra.mxu0 %v1419
    %1492 = vmatpush.bf16.msra.mxu0 %v1417
    %1493 = vmatpush.bf16.msra.mxu0 %v1415
    %1494 = vmatpush.bf16.msra.mxu0 %v1413
    %1495 = vmatpush.bf16.msra.mxu0 %v1411
    %1496 = vmatpush.bf16.msra.mxu0 %v1409
    %1497 = vmatpush.bf16.msra.mxu0 %v1407
    %1498 = vmatpush.bf16.msra.mxu0 %v1405
    %1499 = vmatmul.bf16.gmra.mxu0 %v1253
    %v1500 = vpop.f32.mrf.mxu0
    %v1501 = vadd.f32 %v1488, %v1500
    %v1502 = vpop.f32.mrf.mxu0
    %1503 = vdwg.mxu0
    %v1504 = vmax.f32 %v1475, 0.0
    %v1505 = vmax.f32 %v1501, 0.0
    %v1506 = vpack.c.bf16 %v1504, %v1504
    %v1507 = vpack.c.bf16 %v1505, %v1505
    %v1508 = vld [vmem:[#allocation11] sm:$0xff]
    %v1509 = vld [vmem:[#allocation11 + $0x8] sm:$0xff]
    %v1510 = vld [vmem:[#allocation11 + $0x10] sm:$0xff]
    %v1511 = vld [vmem:[#allocation11 + $0x18] sm:$0xff]
    %v1512 = vld [vmem:[#allocation11 + $0x20] sm:$0xff]
    %v1513 = vld [vmem:[#allocation11 + $0x28] sm:$0xff]
    %v1514 = vld [vmem:[#allocation11 + $0x30] sm:$0xff]
    %v1515 = vld [vmem:[#allocation11 + $0x38] sm:$0xff]
    %v1516 = vld [vmem:[#allocation11 + $0x40] sm:$0xff]
    %v1517 = vld [vmem:[#allocation11 + $0x48] sm:$0xff]
    %v1518 = vld [vmem:[#allocation11 + $0x50] sm:$0xff]
    %v1519 = vld [vmem:[#allocation11 + $0x58] sm:$0xff]
    %v1520 = vld [vmem:[#allocation11 + $0x60] sm:$0xff]
    %v1521 = vld [vmem:[#allocation11 + $0x68] sm:$0xff]
    %v1522 = vld [vmem:[#allocation11 + $0x70] sm:$0xff]
    %v1523 = vld [vmem:[#allocation11 + $0x78] sm:$0xff]
    %v1524 = vld [vmem:[#allocation11 + $0x80] sm:$0xff]
    %v1525 = vld [vmem:[#allocation11 + $0x88] sm:$0xff]
    %v1526 = vld [vmem:[#allocation11 + $0x90] sm:$0xff]
    %v1527 = vld [vmem:[#allocation11 + $0x98] sm:$0xff]
    %v1528 = vld [vmem:[#allocation11 + $0xa0] sm:$0xff]
    %v1529 = vld [vmem:[#allocation11 + $0xa8] sm:$0xff]
    %v1530 = vld [vmem:[#allocation11 + $0xb0] sm:$0xff]
    %v1531 = vld [vmem:[#allocation11 + $0xb8] sm:$0xff]
    %v1532 = vld [vmem:[#allocation11 + $0xc0] sm:$0xff]
    %v1533 = vld [vmem:[#allocation11 + $0xc8] sm:$0xff]
    %v1534 = vld [vmem:[#allocation11 + $0xd0] sm:$0xff]
    %v1535 = vld [vmem:[#allocation11 + $0xd8] sm:$0xff]
    %v1536 = vld [vmem:[#allocation11 + $0xe0] sm:$0xff]
    %v1537 = vld [vmem:[#allocation11 + $0xe8] sm:$0xff]
    %v1538 = vld [vmem:[#allocation11 + $0xf0] sm:$0xff]
    %v1539 = vld [vmem:[#allocation11 + $0xf8] sm:$0xff]
    %v1540 = vld [vmem:[%s14] sm:$0x3]
    %v1542 = vperm.slane %v1540, 0
    %v1543 = vperm.slane %v1540, 1
    %v1578 = vunpack.c.l.b16 %v1508
    %v1579 = vunpack.c.h.b16 %v1508
    %v1580 = vunpack.c.l.b16 %v1509
    %v1581 = vunpack.c.h.b16 %v1509
    %v1582 = vunpack.c.l.b16 %v1510
    %v1583 = vunpack.c.h.b16 %v1510
    %v1584 = vunpack.c.l.b16 %v1511
    %v1585 = vunpack.c.h.b16 %v1511
    %v1586 = vunpack.c.l.b16 %v1512
    %v1587 = vunpack.c.h.b16 %v1512
    %v1588 = vunpack.c.l.b16 %v1513
    %v1589 = vunpack.c.h.b16 %v1513
    %v1590 = vunpack.c.l.b16 %v1514
    %v1591 = vunpack.c.h.b16 %v1514
    %v1592 = vunpack.c.l.b16 %v1515
    %v1593 = vunpack.c.h.b16 %v1515
    %v1594 = vunpack.c.l.b16 %v1516
    %v1595 = vunpack.c.h.b16 %v1516
    %v1596 = vunpack.c.l.b16 %v1517
    %v1597 = vunpack.c.h.b16 %v1517
    %v1598 = vunpack.c.l.b16 %v1518
    %v1599 = vunpack.c.h.b16 %v1518
    %v1600 = vunpack.c.l.b16 %v1519
    %v1601 = vunpack.c.h.b16 %v1519
    %v1602 = vunpack.c.l.b16 %v1520
    %v1603 = vunpack.c.h.b16 %v1520
    %v1604 = vunpack.c.l.b16 %v1521
    %v1605 = vunpack.c.h.b16 %v1521
    %v1606 = vunpack.c.l.b16 %v1522
    %v1607 = vunpack.c.h.b16 %v1522
    %v1608 = vunpack.c.l.b16 %v1523
    %v1609 = vunpack.c.h.b16 %v1523
    %v1610 = vunpack.c.l.b16 %v1524
    %v1611 = vunpack.c.h.b16 %v1524
    %v1612 = vunpack.c.l.b16 %v1525
    %v1613 = vunpack.c.h.b16 %v1525
    %v1614 = vunpack.c.l.b16 %v1526
    %v1615 = vunpack.c.h.b16 %v1526
    %v1616 = vunpack.c.l.b16 %v1527
    %v1617 = vunpack.c.h.b16 %v1527
    %v1618 = vunpack.c.l.b16 %v1528
    %v1619 = vunpack.c.h.b16 %v1528
    %v1620 = vunpack.c.l.b16 %v1529
    %v1621 = vunpack.c.h.b16 %v1529
    %v1622 = vunpack.c.l.b16 %v1530
    %v1623 = vunpack.c.h.b16 %v1530
    %v1624 = vunpack.c.l.b16 %v1531
    %v1625 = vunpack.c.h.b16 %v1531
    %v1626 = vunpack.c.l.b16 %v1532
    %v1627 = vunpack.c.h.b16 %v1532
    %v1628 = vunpack.c.l.b16 %v1533
    %v1629 = vunpack.c.h.b16 %v1533
    %v1630 = vunpack.c.l.b16 %v1534
    %v1631 = vunpack.c.h.b16 %v1534
    %v1632 = vunpack.c.l.b16 %v1535
    %v1633 = vunpack.c.h.b16 %v1535
    %v1634 = vunpack.c.l.b16 %v1536
    %v1635 = vunpack.c.h.b16 %v1536
    %v1636 = vunpack.c.l.b16 %v1537
    %v1637 = vunpack.c.h.b16 %v1537
    %v1638 = vunpack.c.l.b16 %v1538
    %v1639 = vunpack.c.h.b16 %v1538
    %v1640 = vunpack.c.l.b16 %v1539
    %v1641 = vunpack.c.h.b16 %v1539
    %v1642 = vpack.c.b16 %v1580, %v1578
    %v1643 = vpack.c.b16 %v1581, %v1579
    %v1644 = vpack.c.b16 %v1584, %v1582
    %v1645 = vpack.c.b16 %v1585, %v1583
    %v1646 = vpack.c.b16 %v1588, %v1586
    %v1647 = vpack.c.b16 %v1589, %v1587
    %v1648 = vpack.c.b16 %v1592, %v1590
    %v1649 = vpack.c.b16 %v1593, %v1591
    %v1650 = vpack.c.b16 %v1596, %v1594
    %v1651 = vpack.c.b16 %v1597, %v1595
    %v1652 = vpack.c.b16 %v1600, %v1598
    %v1653 = vpack.c.b16 %v1601, %v1599
    %v1654 = vpack.c.b16 %v1604, %v1602
    %v1655 = vpack.c.b16 %v1605, %v1603
    %v1656 = vpack.c.b16 %v1608, %v1606
    %v1657 = vpack.c.b16 %v1609, %v1607
    %v1658 = vpack.c.b16 %v1612, %v1610
    %v1659 = vpack.c.b16 %v1613, %v1611
    %v1660 = vpack.c.b16 %v1616, %v1614
    %v1661 = vpack.c.b16 %v1617, %v1615
    %v1662 = vpack.c.b16 %v1620, %v1618
    %v1663 = vpack.c.b16 %v1621, %v1619
    %v1664 = vpack.c.b16 %v1624, %v1622
    %v1665 = vpack.c.b16 %v1625, %v1623
    %v1666 = vpack.c.b16 %v1628, %v1626
    %v1667 = vpack.c.b16 %v1629, %v1627
    %v1668 = vpack.c.b16 %v1632, %v1630
    %v1669 = vpack.c.b16 %v1633, %v1631
    %v1670 = vpack.c.b16 %v1636, %v1634
    %v1671 = vpack.c.b16 %v1637, %v1635
    %v1672 = vpack.c.b16 %v1640, %v1638
    %v1673 = vpack.c.b16 %v1641, %v1639
    %1706 = vmatpush.bf16.msra.mxu0 %v1656
    %1707 = vmatpush.bf16.msra.mxu0 %v1654
    %1708 = vmatpush.bf16.msra.mxu0 %v1652
    %1709 = vmatpush.bf16.msra.mxu0 %v1650
    %1710 = vmatpush.bf16.msra.mxu0 %v1648
    %1711 = vmatpush.bf16.msra.mxu0 %v1646
    %1712 = vmatpush.bf16.msra.mxu0 %v1644
    %1713 = vmatpush.bf16.msra.mxu0 %v1642
    %1714 = vmatmul.bf16.gmra.mxu0 %v1506
    %v1715 = vpop.f32.mrf.mxu0
    %v1716 = vadd.f32 %v1542, %v1715
    %v1717 = vpop.f32.mrf.mxu0
    %1718 = vdwg.mxu0
    %1719 = vmatpush.bf16.msra.mxu0 %v1672
    %1720 = vmatpush.bf16.msra.mxu0 %v1670
    %1721 = vmatpush.bf16.msra.mxu0 %v1668
    %1722 = vmatpush.bf16.msra.mxu0 %v1666
    %1723 = vmatpush.bf16.msra.mxu0 %v1664
    %1724 = vmatpush.bf16.msra.mxu0 %v1662
    %1725 = vmatpush.bf16.msra.mxu0 %v1660
    %1726 = vmatpush.bf16.msra.mxu0 %v1658
    %1727 = vmatmul.bf16.gmra.mxu0 %v1507
    %v1728 = vpop.f32.mrf.mxu0
    %v1729 = vadd.f32 %v1716, %v1728
    %v1730 = vpop.f32.mrf.mxu0
    %1731 = vdwg.mxu0
    %1732 = vmatpush.bf16.msra.mxu0 %v1657
    %1733 = vmatpush.bf16.msra.mxu0 %v1655
    %1734 = vmatpush.bf16.msra.mxu0 %v1653
    %1735 = vmatpush.bf16.msra.mxu0 %v1651
    %1736 = vmatpush.bf16.msra.mxu0 %v1649
    %1737 = vmatpush.bf16.msra.mxu0 %v1647
    %1738 = vmatpush.bf16.msra.mxu0 %v1645
    %1739 = vmatpush.bf16.msra.mxu0 %v1643
    %1740 = vmatmul.bf16.gmra.mxu0 %v1506
    %v1741 = vpop.f32.mrf.mxu0
    %v1742 = vadd.f32 %v1543, %v1741
    %v1743 = vpop.f32.mrf.mxu0
    %1744 = vdwg.mxu0
    %1745 = vmatpush.bf16.msra.mxu0 %v1673
    %1746 = vmatpush.bf16.msra.mxu0 %v1671
    %1747 = vmatpush.bf16.msra.mxu0 %v1669
    %1748 = vmatpush.bf16.msra.mxu0 %v1667
    %1749 = vmatpush.bf16.msra.mxu0 %v1665
    %1750 = vmatpush.bf16.msra.mxu0 %v1663
    %1751 = vmatpush.bf16.msra.mxu0 %v1661
    %1752 = vmatpush.bf16.msra.mxu0 %v1659
    %1753 = vmatmul.bf16.gmra.mxu0 %v1507
    %v1754 = vpop.f32.mrf.mxu0
    %v1755 = vadd.f32 %v1742, %v1754
    %v1756 = vpop.f32.mrf.mxu0
    %1757 = vdwg.mxu0
    %v1758 = vmax.f32 %v1729, 0.0
    %v1759 = vmax.f32 %v1755, 0.0
    %v1760 = vpack.c.bf16 %v1758, %v1758
    %v1761 = vpack.c.bf16 %v1759, %v1759
    %v1762 = vld [vmem:[#allocation13] sm:$0xff]
    %v1763 = vld [vmem:[#allocation13 + $0x8] sm:$0xff]
    %v1764 = vld [vmem:[#allocation13 + $0x10] sm:$0xff]
    %v1765 = vld [vmem:[#allocation13 + $0x18] sm:$0xff]
    %v1766 = vld [vmem:[#allocation13 + $0x20] sm:$0xff]
    %v1767 = vld [vmem:[#allocation13 + $0x28] sm:$0xff]
    %v1768 = vld [vmem:[#allocation13 + $0x30] sm:$0xff]
    %v1769 = vld [vmem:[#allocation13 + $0x38] sm:$0xff]
    %v1770 = vld [vmem:[#allocation13 + $0x40] sm:$0xff]
    %v1771 = vld [vmem:[#allocation13 + $0x48] sm:$0xff]
    %v1772 = vld [vmem:[#allocation13 + $0x50] sm:$0xff]
    %v1773 = vld [vmem:[#allocation13 + $0x58] sm:$0xff]
    %v1774 = vld [vmem:[#allocation13 + $0x60] sm:$0xff]
    %v1775 = vld [vmem:[#allocation13 + $0x68] sm:$0xff]
    %v1776 = vld [vmem:[#allocation13 + $0x70] sm:$0xff]
    %v1777 = vld [vmem:[#allocation13 + $0x78] sm:$0xff]
    %v1778 = vld [vmem:[#allocation13 + $0x80] sm:$0xff]
    %v1779 = vld [vmem:[#allocation13 + $0x88] sm:$0xff]
    %v1780 = vld [vmem:[#allocation13 + $0x90] sm:$0xff]
    %v1781 = vld [vmem:[#allocation13 + $0x98] sm:$0xff]
    %v1782 = vld [vmem:[#allocation13 + $0xa0] sm:$0xff]
    %v1783 = vld [vmem:[#allocation13 + $0xa8] sm:$0xff]
    %v1784 = vld [vmem:[#allocation13 + $0xb0] sm:$0xff]
    %v1785 = vld [vmem:[#allocation13 + $0xb8] sm:$0xff]
    %v1786 = vld [vmem:[#allocation13 + $0xc0] sm:$0xff]
    %v1787 = vld [vmem:[#allocation13 + $0xc8] sm:$0xff]
    %v1788 = vld [vmem:[#allocation13 + $0xd0] sm:$0xff]
    %v1789 = vld [vmem:[#allocation13 + $0xd8] sm:$0xff]
    %v1790 = vld [vmem:[#allocation13 + $0xe0] sm:$0xff]
    %v1791 = vld [vmem:[#allocation13 + $0xe8] sm:$0xff]
    %v1792 = vld [vmem:[#allocation13 + $0xf0] sm:$0xff]
    %v1793 = vld [vmem:[#allocation13 + $0xf8] sm:$0xff]
    %v1794 = vld [vmem:[%s16] sm:$0x3]
    %v1796 = vperm.slane %v1794, 0
    %v1797 = vperm.slane %v1794, 1
    %v1832 = vunpack.c.l.b16 %v1762
    %v1833 = vunpack.c.h.b16 %v1762
    %v1834 = vunpack.c.l.b16 %v1763
    %v1835 = vunpack.c.h.b16 %v1763
    %v1836 = vunpack.c.l.b16 %v1764
    %v1837 = vunpack.c.h.b16 %v1764
    %v1838 = vunpack.c.l.b16 %v1765
    %v1839 = vunpack.c.h.b16 %v1765
    %v1840 = vunpack.c.l.b16 %v1766
    %v1841 = vunpack.c.h.b16 %v1766
    %v1842 = vunpack.c.l.b16 %v1767
    %v1843 = vunpack.c.h.b16 %v1767
    %v1844 = vunpack.c.l.b16 %v1768
    %v1845 = vunpack.c.h.b16 %v1768
    %v1846 = vunpack.c.l.b16 %v1769
    %v1847 = vunpack.c.h.b16 %v1769
    %v1848 = vunpack.c.l.b16 %v1770
    %v1849 = vunpack.c.h.b16 %v1770
    %v1850 = vunpack.c.l.b16 %v1771
    %v1851 = vunpack.c.h.b16 %v1771
    %v1852 = vunpack.c.l.b16 %v1772
    %v1853 = vunpack.c.h.b16 %v1772
    %v1854 = vunpack.c.l.b16 %v1773
    %v1855 = vunpack.c.h.b16 %v1773
    %v1856 = vunpack.c.l.b16 %v1774
    %v1857 = vunpack.c.h.b16 %v1774
    %v1858 = vunpack.c.l.b16 %v1775
    %v1859 = vunpack.c.h.b16 %v1775
    %v1860 = vunpack.c.l.b16 %v1776
    %v1861 = vunpack.c.h.b16 %v1776
    %v1862 = vunpack.c.l.b16 %v1777
    %v1863 = vunpack.c.h.b16 %v1777
    %v1864 = vunpack.c.l.b16 %v1778
    %v1865 = vunpack.c.h.b16 %v1778
    %v1866 = vunpack.c.l.b16 %v1779
    %v1867 = vunpack.c.h.b16 %v1779
    %v1868 = vunpack.c.l.b16 %v1780
    %v1869 = vunpack.c.h.b16 %v1780
    %v1870 = vunpack.c.l.b16 %v1781
    %v1871 = vunpack.c.h.b16 %v1781
    %v1872 = vunpack.c.l.b16 %v1782
    %v1873 = vunpack.c.h.b16 %v1782
    %v1874 = vunpack.c.l.b16 %v1783
    %v1875 = vunpack.c.h.b16 %v1783
    %v1876 = vunpack.c.l.b16 %v1784
    %v1877 = vunpack.c.h.b16 %v1784
    %v1878 = vunpack.c.l.b16 %v1785
    %v1879 = vunpack.c.h.b16 %v1785
    %v1880 = vunpack.c.l.b16 %v1786
    %v1881 = vunpack.c.h.b16 %v1786
    %v1882 = vunpack.c.l.b16 %v1787
    %v1883 = vunpack.c.h.b16 %v1787
    %v1884 = vunpack.c.l.b16 %v1788
    %v1885 = vunpack.c.h.b16 %v1788
    %v1886 = vunpack.c.l.b16 %v1789
    %v1887 = vunpack.c.h.b16 %v1789
    %v1888 = vunpack.c.l.b16 %v1790
    %v1889 = vunpack.c.h.b16 %v1790
    %v1890 = vunpack.c.l.b16 %v1791
    %v1891 = vunpack.c.h.b16 %v1791
    %v1892 = vunpack.c.l.b16 %v1792
    %v1893 = vunpack.c.h.b16 %v1792
    %v1894 = vunpack.c.l.b16 %v1793
    %v1895 = vunpack.c.h.b16 %v1793
    %v1896 = vpack.c.b16 %v1834, %v1832
    %v1897 = vpack.c.b16 %v1835, %v1833
    %v1898 = vpack.c.b16 %v1838, %v1836
    %v1899 = vpack.c.b16 %v1839, %v1837
    %v1900 = vpack.c.b16 %v1842, %v1840
    %v1901 = vpack.c.b16 %v1843, %v1841
    %v1902 = vpack.c.b16 %v1846, %v1844
    %v1903 = vpack.c.b16 %v1847, %v1845
    %v1904 = vpack.c.b16 %v1850, %v1848
    %v1905 = vpack.c.b16 %v1851, %v1849
    %v1906 = vpack.c.b16 %v1854, %v1852
    %v1907 = vpack.c.b16 %v1855, %v1853
    %v1908 = vpack.c.b16 %v1858, %v1856
    %v1909 = vpack.c.b16 %v1859, %v1857
    %v1910 = vpack.c.b16 %v1862, %v1860
    %v1911 = vpack.c.b16 %v1863, %v1861
    %v1912 = vpack.c.b16 %v1866, %v1864
    %v1913 = vpack.c.b16 %v1867, %v1865
    %v1914 = vpack.c.b16 %v1870, %v1868
    %v1915 = vpack.c.b16 %v1871, %v1869
    %v1916 = vpack.c.b16 %v1874, %v1872
    %v1917 = vpack.c.b16 %v1875, %v1873
    %v1918 = vpack.c.b16 %v1878, %v1876
    %v1919 = vpack.c.b16 %v1879, %v1877
    %v1920 = vpack.c.b16 %v1882, %v1880
    %v1921 = vpack.c.b16 %v1883, %v1881
    %v1922 = vpack.c.b16 %v1886, %v1884
    %v1923 = vpack.c.b16 %v1887, %v1885
    %v1924 = vpack.c.b16 %v1890, %v1888
    %v1925 = vpack.c.b16 %v1891, %v1889
    %v1926 = vpack.c.b16 %v1894, %v1892
    %v1927 = vpack.c.b16 %v1895, %v1893
    %1960 = vmatpush.bf16.msra.mxu0 %v1910
    %1961 = vmatpush.bf16.msra.mxu0 %v1908
    %1962 = vmatpush.bf16.msra.mxu0 %v1906
    %1963 = vmatpush.bf16.msra.mxu0 %v1904
    %1964 = vmatpush.bf16.msra.mxu0 %v1902
    %1965 = vmatpush.bf16.msra.mxu0 %v1900
    %1966 = vmatpush.bf16.msra.mxu0 %v1898
    %1967 = vmatpush.bf16.msra.mxu0 %v1896
    %1968 = vmatmul.bf16.gmra.mxu0 %v1760
    %v1969 = vpop.f32.mrf.mxu0
    %v1970 = vadd.f32 %v1796, %v1969
    %v1971 = vpop.f32.mrf.mxu0
    %1972 = vdwg.mxu0
    %1973 = vmatpush.bf16.msra.mxu0 %v1926
    %1974 = vmatpush.bf16.msra.mxu0 %v1924
    %1975 = vmatpush.bf16.msra.mxu0 %v1922
    %1976 = vmatpush.bf16.msra.mxu0 %v1920
    %1977 = vmatpush.bf16.msra.mxu0 %v1918
    %1978 = vmatpush.bf16.msra.mxu0 %v1916
    %1979 = vmatpush.bf16.msra.mxu0 %v1914
    %1980 = vmatpush.bf16.msra.mxu0 %v1912
    %1981 = vmatmul.bf16.gmra.mxu0 %v1761
    %v1982 = vpop.f32.mrf.mxu0
    %v1983 = vadd.f32 %v1970, %v1982
    %v1984 = vpop.f32.mrf.mxu0
    %1985 = vdwg.mxu0
    %1986 = vmatpush.bf16.msra.mxu0 %v1911
    %1987 = vmatpush.bf16.msra.mxu0 %v1909
    %1988 = vmatpush.bf16.msra.mxu0 %v1907
    %1989 = vmatpush.bf16.msra.mxu0 %v1905
    %1990 = vmatpush.bf16.msra.mxu0 %v1903
    %1991 = vmatpush.bf16.msra.mxu0 %v1901
    %1992 = vmatpush.bf16.msra.mxu0 %v1899
    %1993 = vmatpush.bf16.msra.mxu0 %v1897
    %1994 = vmatmul.bf16.gmra.mxu0 %v1760
    %v1995 = vpop.f32.mrf.mxu0
    %v1996 = vadd.f32 %v1797, %v1995
    %v1997 = vpop.f32.mrf.mxu0
    %1998 = vdwg.mxu0
    %1999 = vmatpush.bf16.msra.mxu0 %v1927
    %2000 = vmatpush.bf16.msra.mxu0 %v1925
    %2001 = vmatpush.bf16.msra.mxu0 %v1923
    %2002 = vmatpush.bf16.msra.mxu0 %v1921
    %2003 = vmatpush.bf16.msra.mxu0 %v1919
    %2004 = vmatpush.bf16.msra.mxu0 %v1917
    %2005 = vmatpush.bf16.msra.mxu0 %v1915
    %2006 = vmatpush.bf16.msra.mxu0 %v1913
    %2007 = vmatmul.bf16.gmra.mxu0 %v1761
    %v2008 = vpop.f32.mrf.mxu0
    %v2009 = vadd.f32 %v1996, %v2008
    %v2010 = vpop.f32.mrf.mxu0
    %2011 = vdwg.mxu0
    %v2012 = vmax.f32 %v1983, 0.0
    %v2013 = vmax.f32 %v2009, 0.0
    %v2014 = vpack.c.bf16 %v2012, %v2012
    %v2015 = vpack.c.bf16 %v2013, %v2013
    %v2016 = vld [vmem:[%s17] sm:$0xf]
    %v2017 = vld [vmem:[%s17 + $0x4] sm:$0xf]
    %v2018 = vld [vmem:[%s17 + $0x8] sm:$0xf]
    %v2019 = vld [vmem:[%s17 + $0xc] sm:$0xf]
    %v2020 = vld [vmem:[%s17 + $0x10] sm:$0xf]
    %v2021 = vld [vmem:[%s17 + $0x14] sm:$0xf]
    %v2022 = vld [vmem:[%s17 + $0x18] sm:$0xf]
    %v2023 = vld [vmem:[%s17 + $0x1c] sm:$0xf]
    %v2024 = vld [vmem:[%s17 + $0x20] sm:$0xf]
    %v2025 = vld [vmem:[%s17 + $0x24] sm:$0xf]
    %v2026 = vld [vmem:[%s17 + $0x28] sm:$0xf]
    %v2027 = vld [vmem:[%s17 + $0x2c] sm:$0xf]
    %v2028 = vld [vmem:[%s17 + $0x30] sm:$0xf]
    %v2029 = vld [vmem:[%s17 + $0x34] sm:$0xf]
    %v2030 = vld [vmem:[%s17 + $0x38] sm:$0xf]
    %v2031 = vld [vmem:[%s17 + $0x3c] sm:$0xf]
    %v2032 = vld [vmem:[%s17 + $0x40] sm:$0xf]
    %v2033 = vld [vmem:[%s17 + $0x44] sm:$0xf]
    %v2034 = vld [vmem:[%s17 + $0x48] sm:$0xf]
    %v2035 = vld [vmem:[%s17 + $0x4c] sm:$0xf]
    %v2036 = vld [vmem:[%s17 + $0x50] sm:$0xf]
    %v2037 = vld [vmem:[%s17 + $0x54] sm:$0xf]
    %v2038 = vld [vmem:[%s17 + $0x58] sm:$0xf]
    %v2039 = vld [vmem:[%s17 + $0x5c] sm:$0xf]
    %v2040 = vld [vmem:[%s17 + $0x60] sm:$0xf]
    %v2041 = vld [vmem:[%s17 + $0x64] sm:$0xf]
    %v2042 = vld [vmem:[%s17 + $0x68] sm:$0xf]
    %v2043 = vld [vmem:[%s17 + $0x6c] sm:$0xf]
    %v2044 = vld [vmem:[%s17 + $0x70] sm:$0xf]
    %v2045 = vld [vmem:[%s17 + $0x74] sm:$0xf]
    %v2046 = vld [vmem:[%s17 + $0x78] sm:$0xf]
    %v2047 = vld [vmem:[%s17 + $0x7c] sm:$0xf]
    %v2048 = vld [vmem:[%s18] sm:$0x1]
    %v2050 = vperm.slane %v2048, 0
    %v2084 = vunpack.c.l.b16 %v2016
    %v2085 = vunpack.c.l.b16 %v2017
    %v2086 = vunpack.c.l.b16 %v2018
    %v2087 = vunpack.c.l.b16 %v2019
    %v2088 = vunpack.c.l.b16 %v2020
    %v2089 = vunpack.c.l.b16 %v2021
    %v2090 = vunpack.c.l.b16 %v2022
    %v2091 = vunpack.c.l.b16 %v2023
    %v2092 = vunpack.c.l.b16 %v2024
    %v2093 = vunpack.c.l.b16 %v2025
    %v2094 = vunpack.c.l.b16 %v2026
    %v2095 = vunpack.c.l.b16 %v2027
    %v2096 = vunpack.c.l.b16 %v2028
    %v2097 = vunpack.c.l.b16 %v2029
    %v2098 = vunpack.c.l.b16 %v2030
    %v2099 = vunpack.c.l.b16 %v2031
    %v2100 = vunpack.c.l.b16 %v2032
    %v2101 = vunpack.c.l.b16 %v2033
    %v2102 = vunpack.c.l.b16 %v2034
    %v2103 = vunpack.c.l.b16 %v2035
    %v2104 = vunpack.c.l.b16 %v2036
    %v2105 = vunpack.c.l.b16 %v2037
    %v2106 = vunpack.c.l.b16 %v2038
    %v2107 = vunpack.c.l.b16 %v2039
    %v2108 = vunpack.c.l.b16 %v2040
    %v2109 = vunpack.c.l.b16 %v2041
    %v2110 = vunpack.c.l.b16 %v2042
    %v2111 = vunpack.c.l.b16 %v2043
    %v2112 = vunpack.c.l.b16 %v2044
    %v2113 = vunpack.c.l.b16 %v2045
    %v2114 = vunpack.c.l.b16 %v2046
    %v2115 = vunpack.c.l.b16 %v2047
    %v2116 = vpack.c.b16 %v2085, %v2084
    %v2117 = vpack.c.b16 %v2087, %v2086
    %v2118 = vpack.c.b16 %v2089, %v2088
    %v2119 = vpack.c.b16 %v2091, %v2090
    %v2120 = vpack.c.b16 %v2093, %v2092
    %v2121 = vpack.c.b16 %v2095, %v2094
    %v2122 = vpack.c.b16 %v2097, %v2096
    %v2123 = vpack.c.b16 %v2099, %v2098
    %v2124 = vpack.c.b16 %v2101, %v2100
    %v2125 = vpack.c.b16 %v2103, %v2102
    %v2126 = vpack.c.b16 %v2105, %v2104
    %v2127 = vpack.c.b16 %v2107, %v2106
    %v2128 = vpack.c.b16 %v2109, %v2108
    %v2129 = vpack.c.b16 %v2111, %v2110
    %v2130 = vpack.c.b16 %v2113, %v2112
    %v2131 = vpack.c.b16 %v2115, %v2114
    %2148 = vmatpush.bf16.msra.mxu0 %v2123
    %2149 = vmatpush.bf16.msra.mxu0 %v2122
    %2150 = vmatpush.bf16.msra.mxu0 %v2121
    %2151 = vmatpush.bf16.msra.mxu0 %v2120
    %2152 = vmatpush.bf16.msra.mxu0 %v2119
    %2153 = vmatpush.bf16.msra.mxu0 %v2118
    %2154 = vmatpush.bf16.msra.mxu0 %v2117
    %2155 = vmatpush.bf16.msra.mxu0 %v2116
    %2156 = vmatmul.bf16.gmra.mxu0 %v2014
    %v2157 = vpop.f32.mrf.mxu0
    %v2158 = vadd.f32 %v2050, %v2157
    %v2159 = vpop.f32.mrf.mxu0
    %2160 = vdwg.mxu0
    %2161 = vmatpush.bf16.msra.mxu0 %v2131
    %2162 = vmatpush.bf16.msra.mxu0 %v2130
    %2163 = vmatpush.bf16.msra.mxu0 %v2129
    %2164 = vmatpush.bf16.msra.mxu0 %v2128
    %2165 = vmatpush.bf16.msra.mxu0 %v2127
    %2166 = vmatpush.bf16.msra.mxu0 %v2126
    %2167 = vmatpush.bf16.msra.mxu0 %v2125
    %2168 = vmatpush.bf16.msra.mxu0 %v2124
    %2169 = vmatmul.bf16.gmra.mxu0 %v2015
    %v2170 = vpop.f32.mrf.mxu0
    %v2171 = vadd.f32 %v2158, %v2170
    %v2172 = vpop.f32.mrf.mxu0
    %2173 = vdwg.mxu0
    %v2174 = vxor.u32 %v2171, 2147483648
    %v2175 = vmul.f32 %v2174, 1.442695
    %v2176 = vpow.pop %v2175
    %v2177 = vadd.f32 %v2176, 1.0
    %v2178 = vrcp.pop %v2177
    %v2179 = vmul.f32 %v2177, %v2178
    %v2180 = vsub.f32 1.0, %v2179
    %v2181 = vmul.f32 %v2178, %v2180
    %v2182 = vadd.f32 %v2178, %v2181
    %vm2183 = vweird.f32 %v2177
    %vm2184 = vweird.f32 %v2178
    %vm2185 = vmor %vm2183, %vm2184
    %v2186 = vsel %vm2185, %v2178, %v2182
    %v2187 = vand.u32 2147483647, %v2177
    %vm2188 = vcmp.eq.f32.partialorder %v2187, 8.507059e+37
    %v2189 = vand.u32 %v2177, 2147483648
    %v2190 = vor.u32 1.1754944e-38, %v2189
    %v2191 = vsel %vm2188, %v2190, %v2186
    %v2192 = vmul.f32 1.0, %v2191
    %v2193 = vpack.c.bf16 %v2192, %v2192
    %vm2194 = vcmask 257024
    %2195 = vst.msk [vmem:[#allocation14] sm:$0xf] %vm2194, %v2193
    // Predicated region
    $region106: #{tpu_custom_call.1} parent=1 // pred_check
      _
    $region107: #{tpu_custom_call.1} parent=1 // pred_check_branch
      %2197 = sbr.rel (0) target = $region109
    $region108: #{tpu_custom_call.1} parent=1 // pred_region
      %2199 = vsyncadd [#allocation4], 0
      %s2201 = sshll.u32 [#allocation14], 4
      %s2202 = int_to_ptr.vmem [resolvable:$true] %s2201
      %s2203 = sshll.u32 %s19, 4
      %s2204 = int_to_ptr.hbm [resolvable:$true] %s2203
      %2206 = dma.vmem_to_hbm [thread:$0]  %s2202, 64, %s2204, [#allocation4]
    $region109: #{tpu_custom_call.1} parent=1 // pred_fallthru
      _
    // Predicated region
    $region110: #{tpu_custom_call.1} parent=1 // pred_check
      _
    $region111: #{tpu_custom_call.1} parent=1 // pred_check_branch
      %2208 = sbr.rel (0) target = $region113
    $region112: #{tpu_custom_call.1} parent=1 // pred_region
      %2210 = dma.done [#allocation4], 64
    $region113: #{tpu_custom_call.1} parent=1 // pred_fallthru
      _
    %2211 = vsyncpa [#allocation3], 1
    %2212 = vsyncpa [#allocation6], 1
    %2213 = vsyncpa [#allocation9], 1
    %2214 = vsyncpa [#allocation12], 1
    %2215 = vsyncpa [#allocation4], 1

</llo_original>
